<compile_context>
chip_gen: v5e
topology: v5e:2x2
jax: 0.10.0
libtpu: 0.0.40
codegen_flags: <defaults>
</compile_context>

<pallas_src>
import jax
import jax.numpy as jnp
from jax import lax
from jax.experimental import pallas as pl
from jax.experimental.pallas import tpu as pltpu


_HASH_C1 = 0x9E3779B1
_HASH_C2 = 0x85EBCA6B


def _keep_mask_ref(n_rows, n_cols, seed, thresh):
    """Pure-JAX mirror of the in-kernel keep-mask (global row index => tiling-invariant)."""
    row = jnp.arange(n_rows, dtype=jnp.uint32)[:, None]
    col = jnp.arange(n_cols, dtype=jnp.uint32)[None, :]
    g = row * jnp.uint32(n_cols) + col
    h = (g ^ jnp.uint32(seed)) * jnp.uint32(_HASH_C1)
    h = h ^ (h >> 15)
    h = h * jnp.uint32(_HASH_C2)
    bits24 = (h >> 8).astype(jnp.int32)
    return bits24 > jnp.int32(thresh)


def sda_init_kernel(si_ref, alpha_ref,                      # SMEM scalars
                    x_ref, we_ref, be_ref, wd_ref, bd_ref,  # VMEM tensors
                    yhat_ref):                              # VMEM output
    tb, d_in = x_ref.shape
    x = x_ref[...]

    # --- random keep-mask:  rand > frac  <=>  bits24 > floor(frac * 2^24) ----
    seed = si_ref[0].astype(jnp.uint32)
    thresh = si_ref[1]
    row0 = (pl.program_id(0) * tb).astype(jnp.uint32)
    row = lax.broadcasted_iota(jnp.int32, (tb, 1), 0).astype(jnp.uint32)
    col = lax.broadcasted_iota(jnp.int32, (1, d_in), 1).astype(jnp.uint32)
    # (tb,1) multiply + broadcast add keeps the full-tile 32-bit mul off the VALU.
    g = (row + row0) * jnp.uint32(d_in) + col
    h = (g ^ seed) * jnp.uint32(_HASH_C1)
    h = h ^ (h >> 15)
    h = h * jnp.uint32(_HASH_C2)
    keep = (h >> 8).astype(jnp.int32) > thresh

    # Mask via select (no int->float convert, no extra multiply); cast to bf16
    # only for the MXU operand.  Accumulation / bias / PReLU stay in f32.
    y_masked = jnp.where(keep, x, 0.0).astype(jnp.bfloat16)

    # encoder: Linear + PReLU (single shared alpha, nn.PReLU() default).
    z = jnp.dot(y_masked, we_ref[...], preferred_element_type=jnp.float32) + be_ref[...]
    alpha = alpha_ref[0]
    z = jnp.where(z > 0.0, z, alpha * z)

    # decoder: Linear (bf16 MXU operands, f32 accumulate).
    y_hat = jnp.dot(z.astype(jnp.bfloat16), wd_ref[...],
                    preferred_element_type=jnp.float32) + bd_ref[...]
    yhat_ref[...] = y_hat.astype(yhat_ref.dtype)


def _pick_tile_b(B, max_rows, min_steps=2):
    """Largest multiple of 8 dividing B, <= max_rows, with >= min_steps grid steps."""
    if B % 8 != 0 or B < 8 * min_steps:
        return B                      # tiny/awkward batch: single step is all we can do
    cap = min(max_rows, B // min_steps)
    cap = max(8, (cap // 8) * 8)
    t = cap
    while t >= 8:
        if B % t == 0:
            return int(t)
        t -= 8
    return B


def _vmem_plan(B, D_pad, H_pad, x_bytes, out_bytes):
    """VMEM-aware tile size + vmem limit (v7x: 64 MiB/TC; v5e/v6e: 128 MiB)."""
    try:
        phys = int(getattr(pltpu.get_tpu_info(), "vmem_capacity_bytes",
                           64 * 1024 * 1024))
    except Exception:
        phys = 64 * 1024 * 1024                        # conservative fallback
    budget = min(phys * 3 // 4, 100 * 1024 * 1024)     # ~48 MiB v7x, ~96 MiB v5e/v6e

    # resident: single-buffered bf16 weights + f32 biases
    resident = 2 * D_pad * H_pad * 2 + (H_pad + D_pad) * 4
    # per-batch-row working set:
    per_row = (2 * D_pad * x_bytes       # x: double-buffered input
               + 2 * D_pad * out_bytes   # y_hat: double-buffered output
               + 2 * D_pad               # y_masked (bf16)
               + 6 * H_pad               # z f32 + z bf16
               + 4 * D_pad)              # y_hat f32 temporary
    max_rows = max(8, (budget - resident) // per_row)
    return _pick_tile_b(B, max_rows), int(budget)


def sda_initialiser_forward(x, w_enc, b_enc, w_dec, b_dec,
                            alpha, mask_fraction, seed, tile_b=None):
    B, D_in = x.shape
    H = w_enc.shape[1]
    assert w_enc.shape == (D_in, H)
    assert w_dec.shape == (H, D_in)
    x_orig = x
    b_enc = jnp.asarray(b_enc, jnp.float32).reshape(1, H)
    b_dec = jnp.asarray(b_dec, jnp.float32).reshape(1, D_in)

    # Pad D_in and H to multiples of 128: lane-dense tiles, unmasked stores on
    # the y_hat path, full MXU K/N.  Exact: PReLU(0)=0, zero rows/cols add 0;
    # padded y_hat columns are sliced off below.
    D_pad = max(128, ((D_in + 127) // 128) * 128)
    H_pad = max(128, ((H + 127) // 128) * 128)
    if D_pad != D_in:
        x = jnp.pad(x, ((0, 0), (0, D_pad - D_in)))
        w_enc = jnp.pad(w_enc, ((0, D_pad - D_in), (0, 0)))
        w_dec = jnp.pad(w_dec, ((0, 0), (0, D_pad - D_in)))
        b_dec = jnp.pad(b_dec, ((0, 0), (0, D_pad - D_in)))
    if H_pad != H:
        w_enc = jnp.pad(w_enc, ((0, 0), (0, H_pad - H)))
        b_enc = jnp.pad(b_enc, ((0, 0), (0, H_pad - H)))
        w_dec = jnp.pad(w_dec, ((0, H_pad - H), (0, 0)))

    # Resident weights in bf16 (half VMEM footprint / one-time DMA, bf16 MXU).
    w_enc = w_enc.astype(jnp.bfloat16)
    w_dec = w_dec.astype(jnp.bfloat16)

    out_dtype = x.dtype
    x_bytes = x.dtype.itemsize
    out_bytes = jnp.dtype(out_dtype).itemsize

    auto_tile, vmem_limit = _vmem_plan(B, D_pad, H_pad, x_bytes, out_bytes)
    if tile_b is None:
        tile_b = auto_tile
    assert B % tile_b == 0
    grid = (B // tile_b,)

    # scalars: [seed, threshold] in one SMEM int32 array; alpha separately (f32).
    thresh = int(float(mask_fraction) * (1 << 24))
    si = jnp.asarray([int(seed), thresh], dtype=jnp.int32)
    alpha_arr = jnp.asarray([alpha], dtype=jnp.float32)

    smem = pl.BlockSpec(memory_space=pltpu.MemorySpace.SMEM)

    flops = 4 * B * D_pad * H_pad
    bytes_accessed = (B * D_pad * (x_bytes + out_bytes)
                      + 2 * D_pad * H_pad * 2 + (H_pad + D_pad) * 4)

    def build(single_buffer_weights):
        def resident(shape):
            if single_buffer_weights:
                # Constant index_map => second pipeline buffer is dead weight.
                return pl.BlockSpec(shape, lambda i: (0, 0),
                                    pipeline_mode=pl.Buffered(1))
            return pl.BlockSpec(shape, lambda i: (0, 0))

        return pl.pallas_call(
            sda_init_kernel,
            out_shape=jax.ShapeDtypeStruct((B, D_pad), out_dtype),
            grid=grid,
            in_specs=[smem, smem,
                      pl.BlockSpec((tile_b, D_pad), lambda i: (i, 0)),  # x (tiled)
                      resident((D_pad, H_pad)),                         # W_enc
                      resident((1, H_pad)),                             # b_enc
                      resident((H_pad, D_pad)),                         # W_dec
                      resident((1, D_pad))],                            # b_dec
            out_specs=pl.BlockSpec((tile_b, D_pad), lambda i: (i, 0)),
            compiler_params=pltpu.CompilerParams(
                dimension_semantics=("parallel",),
                vmem_limit_bytes=vmem_limit),
            cost_estimate=pl.CostEstimate(flops=flops, transcendentals=0,
                                          bytes_accessed=bytes_accessed),
        )

    args = (si, alpha_arr, x, w_enc, b_enc, w_dec, b_dec)
    try:
        y_hat = build(True)(*args)
    except Exception:
        # pipeline_mode=pl.Buffered(1) unsupported on this jax version:
        # fall back to default double-buffered resident weights.
        y_hat = build(False)(*args)

    if D_pad != D_in:
        y_hat = y_hat[:, :D_in]
    # y = x (base_model is None for a fresh model): no copy, no extra HBM traffic.
    return x_orig, y_hat


if __name__ == "__main__":
    # Small shapes consistent with the module:
    #   SDA_params: input_dim = 128, hidden_dims = [64, ...], mask_fraction = 0.2
    B, D_in, H = 16, 128, 64
    mask_fraction = 0.2
    alpha = 0.25          # nn.PReLU() default init
    seed = 0

    key = jax.random.PRNGKey(0)
    kx, kwe, kbe, kwd, kbd = jax.random.split(key, 5)

    x = jax.random.normal(kx, (B, D_in), dtype=jnp.float32)

    # Deterministic parameter init (PyTorch Linear-style uniform bounds, 1-D biases).
    bound_e = 1.0 / (D_in ** 0.5)
    w_enc = jax.random.uniform(kwe, (D_in, H), minval=-bound_e, maxval=bound_e,
                               dtype=jnp.float32)
    b_enc = jax.random.uniform(kbe, (H,), minval=-bound_e, maxval=bound_e,
                               dtype=jnp.float32)
    bound_d = 1.0 / (H ** 0.5)
    w_dec = jax.random.uniform(kwd, (H, D_in), minval=-bound_d, maxval=bound_d,
                               dtype=jnp.float32)
    b_dec = jax.random.uniform(kbd, (D_in,), minval=-bound_d, maxval=bound_d,
                               dtype=jnp.float32)

    # tile_b=8 exercises a 2-step batch grid (keeps DMA/compute overlap and
    # both v7x TensorCores busy) on the small demo shape.
    y, y_hat = sda_initialiser_forward(x, w_enc, b_enc, w_dec, b_dec,
                                       alpha, mask_fraction, seed=seed, tile_b=8)
    jax.block_until_ready((y, y_hat))

    assert y.shape == (B, D_in) and y_hat.shape == (B, D_in)
    assert y.dtype == jnp.float32 and y_hat.dtype == jnp.float32
    # y must be the untouched input (base_model is None).
    assert bool(jnp.allclose(y, x))

    # Pure-JAX reference with the identical hash-based mask and bf16-quantized
    # MXU operands (f32 accumulation), so only accumulation order differs.
    thresh = int(float(mask_fraction) * (1 << 24))
    keep = _keep_mask_ref(B, D_in, seed, thresh)
    y_m = jnp.where(keep, x, 0.0).astype(jnp.bfloat16).astype(jnp.float32)
    we_q = w_enc.astype(jnp.bfloat16).astype(jnp.float32)
    wd_q = w_dec.astype(jnp.bfloat16).astype(jnp.float32)
    z_ref = y_m @ we_q + b_enc
    z_ref = jnp.where(z_ref > 0.0, z_ref, alpha * z_ref)
    y_hat_ref = z_ref.astype(jnp.bfloat16).astype(jnp.float32) @ wd_q + b_dec
    assert bool(jnp.allclose(y_hat, y_hat_ref, rtol=2e-2, atol=2e-2))

    print("KERNEL_OK")
</pallas_src>

<mosaic_0001>
module attributes {stable_mosaic.version = 11 : i64} {
  func.func @sda_init_kernel(%arg0: i32, %arg1: memref<2xi32, #tpu.memory_space<smem>>, %arg2: memref<1xf32, #tpu.memory_space<smem>>, %arg3: memref<8x128xf32, #tpu.memory_space<vmem>>, %arg4: memref<128x128xbf16, #tpu.memory_space<vmem>>, %arg5: memref<1x128xf32, #tpu.memory_space<vmem>>, %arg6: memref<128x128xbf16, #tpu.memory_space<vmem>>, %arg7: memref<1x128xf32, #tpu.memory_space<vmem>>, %arg8: memref<8x128xf32, #tpu.memory_space<vmem>>) attributes {dimension_semantics = [#tpu.dimension_semantics<parallel>], iteration_bounds = array<i64: 2>, scalar_prefetch = 0 : i64, scratch_operands = 0 : i64, tpu.core_type = #tpu.core_type<tc>, window_params = [{transform_indices = @transform_0, window_bounds = array<i64: 2>}, {transform_indices = @transform_1, window_bounds = array<i64: 1>}, {transform_indices = @transform_2, window_bounds = array<i64: 8, 128>}, {pipeline_mode = #tpu.pipeline_mode<synchronous>, transform_indices = @transform_3, window_bounds = array<i64: 128, 128>}, {pipeline_mode = #tpu.pipeline_mode<synchronous>, transform_indices = @transform_4, window_bounds = array<i64: 1, 128>}, {pipeline_mode = #tpu.pipeline_mode<synchronous>, transform_indices = @transform_5, window_bounds = array<i64: 128, 128>}, {pipeline_mode = #tpu.pipeline_mode<synchronous>, transform_indices = @transform_6, window_bounds = array<i64: 1, 128>}, {transform_indices = @transform_7, window_bounds = array<i64: 8, 128>}]} {
    %c0 = arith.constant 0 : index
    %c0_0 = arith.constant 0 : index
    %0 = vector.load %arg3[%c0, %c0_0] : memref<8x128xf32, #tpu.memory_space<vmem>>, vector<8x128xf32>
    %c0_1 = arith.constant 0 : index
    %1 = memref.load %arg1[%c0_1] : memref<2xi32, #tpu.memory_space<smem>>
    %c1 = arith.constant 1 : index
    %2 = memref.load %arg1[%c1] : memref<2xi32, #tpu.memory_space<smem>>
    %c8_i32 = arith.constant 8 : i32
    %3 = arith.muli %arg0, %c8_i32 : i32
    %4 = tpu.iota {dimensions = array<i32: 0>} : vector<8x1xi32>
    %5 = tpu.iota {dimensions = array<i32: 1>} : vector<1x128xi32>
    %6 = vector.broadcast %3 : i32 to vector<8x1xi32>
    %7 = arith.addi %4, %6 : vector<8x1xi32>
    %c128_i32 = arith.constant 128 : i32
    %8 = vector.broadcast %c128_i32 : i32 to vector<8x1xi32>
    %9 = arith.muli %7, %8 : vector<8x1xi32>
    %10 = vector.broadcast %9 : vector<8x1xi32> to vector<8x128xi32>
    %11 = vector.broadcast %5 : vector<1x128xi32> to vector<8x128xi32>
    %12 = arith.addi %10, %11 : vector<8x128xi32>
    %13 = vector.broadcast %1 : i32 to vector<8x128xi32>
    %14 = arith.xori %12, %13 : vector<8x128xi32>
    %c-1640531535_i32 = arith.constant -1640531535 : i32
    %15 = vector.broadcast %c-1640531535_i32 : i32 to vector<8x128xi32>
    %16 = arith.muli %14, %15 : vector<8x128xi32>
    %c15_i32 = arith.constant 15 : i32
    %17 = vector.broadcast %c15_i32 : i32 to vector<8x128xi32>
    %18 = arith.shrui %16, %17 : vector<8x128xi32>
    %19 = arith.xori %16, %18 : vector<8x128xi32>
    %c-2048144789_i32 = arith.constant -2048144789 : i32
    %20 = vector.broadcast %c-2048144789_i32 : i32 to vector<8x128xi32>
    %21 = arith.muli %19, %20 : vector<8x128xi32>
    %c8_i32_2 = arith.constant 8 : i32
    %22 = vector.broadcast %c8_i32_2 : i32 to vector<8x128xi32>
    %23 = arith.shrui %21, %22 : vector<8x128xi32>
    %24 = vector.broadcast %2 : i32 to vector<8x128xi32>
    %25 = arith.cmpi sgt, %23, %24 : vector<8x128xi32>
    %cst = arith.constant 0.000000e+00 : f32
    %26 = vector.broadcast %cst : f32 to vector<8x128xf32>
    %27 = arith.select %25, %0, %26 : vector<8x128xi1>, vector<8x128xf32>
    %28 = arith.truncf %27 : vector<8x128xf32> to vector<8x128xbf16>
    %c0_3 = arith.constant 0 : index
    %c0_4 = arith.constant 0 : index
    %29 = vector.load %arg4[%c0_3, %c0_4] : memref<128x128xbf16, #tpu.memory_space<vmem>>, vector<128x128xbf16>
    %cst_5 = arith.constant dense<0.000000e+00> : vector<8x128xf32>
    %30 = tpu.matmul %28, %29, %cst_5 {dimension_numbers = #tpu.dot_dimension_numbers<[1], [0], [0], [1], [0, 0, 1, 1], [], []>} : vector<8x128xbf16>, vector<128x128xbf16>, vector<8x128xf32> -> vector<8x128xf32>
    %c0_6 = arith.constant 0 : index
    %c0_7 = arith.constant 0 : index
    %31 = vector.load %arg5[%c0_6, %c0_7] : memref<1x128xf32, #tpu.memory_space<vmem>>, vector<1x128xf32>
    %32 = vector.broadcast %31 : vector<1x128xf32> to vector<8x128xf32>
    %33 = arith.addf %30, %32 : vector<8x128xf32>
    %c0_8 = arith.constant 0 : index
    %34 = memref.load %arg2[%c0_8] : memref<1xf32, #tpu.memory_space<smem>>
    %cst_9 = arith.constant 0.000000e+00 : f32
    %35 = vector.broadcast %cst_9 : f32 to vector<8x128xf32>
    %36 = arith.cmpf ogt, %33, %35 : vector<8x128xf32>
    %37 = vector.broadcast %34 : f32 to vector<8x128xf32>
    %38 = arith.mulf %37, %33 : vector<8x128xf32>
    %39 = arith.select %36, %33, %38 : vector<8x128xi1>, vector<8x128xf32>
    %40 = arith.truncf %39 : vector<8x128xf32> to vector<8x128xbf16>
    %c0_10 = arith.constant 0 : index
    %c0_11 = arith.constant 0 : index
    %41 = vector.load %arg6[%c0_10, %c0_11] : memref<128x128xbf16, #tpu.memory_space<vmem>>, vector<128x128xbf16>
    %cst_12 = arith.constant dense<0.000000e+00> : vector<8x128xf32>
    %42 = tpu.matmul %40, %41, %cst_12 {dimension_numbers = #tpu.dot_dimension_numbers<[1], [0], [0], [1], [0, 0, 1, 1], [], []>} : vector<8x128xbf16>, vector<128x128xbf16>, vector<8x128xf32> -> vector<8x128xf32>
    %c0_13 = arith.constant 0 : index
    %c0_14 = arith.constant 0 : index
    %43 = vector.load %arg7[%c0_13, %c0_14] : memref<1x128xf32, #tpu.memory_space<vmem>>, vector<1x128xf32>
    %44 = vector.broadcast %43 : vector<1x128xf32> to vector<8x128xf32>
    %45 = arith.addf %42, %44 : vector<8x128xf32>
    %c0_15 = arith.constant 0 : index
    %c0_16 = arith.constant 0 : index
    %46 = vector.load %arg8[%c0_15, %c0_16] : memref<8x128xf32, #tpu.memory_space<vmem>>, vector<8x128xf32>
    tpu.vector_store %arg8[%c0_15, %c0_16], %45 {strides = array<i32>} : memref<8x128xf32, #tpu.memory_space<vmem>>, vector<8x128xf32>,
    return
  }
  func.func @transform_0(%arg0: i32) -> i32 {
    %c0_i32 = arith.constant 0 : i32
    %c0_i32_0 = arith.constant 0 : i32
    return %c0_i32 : i32
  }
  func.func @transform_1(%arg0: i32) -> i32 {
    %c0_i32 = arith.constant 0 : i32
    %c0_i32_0 = arith.constant 0 : i32
    return %c0_i32 : i32
  }
  func.func @transform_2(%arg0: i32) -> (i32, i32) {
    %c0_i32 = arith.constant 0 : i32
    %c0_i32_0 = arith.constant 0 : i32
    return %arg0, %c0_i32 : i32, i32
  }
  func.func @transform_3(%arg0: i32) -> (i32, i32) {
    %c0_i32 = arith.constant 0 : i32
    %c0_i32_0 = arith.constant 0 : i32
    %c0_i32_1 = arith.constant 0 : i32
    return %c0_i32, %c0_i32_0 : i32, i32
  }
  func.func @transform_4(%arg0: i32) -> (i32, i32) {
    %c0_i32 = arith.constant 0 : i32
    %c0_i32_0 = arith.constant 0 : i32
    %c0_i32_1 = arith.constant 0 : i32
    return %c0_i32, %c0_i32_0 : i32, i32
  }
  func.func @transform_5(%arg0: i32) -> (i32, i32) {
    %c0_i32 = arith.constant 0 : i32
    %c0_i32_0 = arith.constant 0 : i32
    %c0_i32_1 = arith.constant 0 : i32
    return %c0_i32, %c0_i32_0 : i32, i32
  }
  func.func @transform_6(%arg0: i32) -> (i32, i32) {
    %c0_i32 = arith.constant 0 : i32
    %c0_i32_0 = arith.constant 0 : i32
    %c0_i32_1 = arith.constant 0 : i32
    return %c0_i32, %c0_i32_0 : i32, i32
  }
  func.func @transform_7(%arg0: i32) -> (i32, i32) {
    %c0_i32 = arith.constant 0 : i32
    %c0_i32_0 = arith.constant 0 : i32
    return %arg0, %c0_i32 : i32, i32
  }
}

module attributes {stable_mosaic.version = 11 : i64} {
  func.func @sda_init_kernel(%arg0: i32, %arg1: memref<2xi32, #tpu.memory_space<smem>>, %arg2: memref<1xf32, #tpu.memory_space<smem>>, %arg3: memref<8x128xf32, #tpu.memory_space<vmem>>, %arg4: memref<128x128xbf16, #tpu.memory_space<vmem>>, %arg5: memref<1x128xf32, #tpu.memory_space<vmem>>, %arg6: memref<128x128xbf16, #tpu.memory_space<vmem>>, %arg7: memref<1x128xf32, #tpu.memory_space<vmem>>, %arg8: memref<8x128xf32, #tpu.memory_space<vmem>>) attributes {dimension_semantics = [#tpu.dimension_semantics<parallel>], iteration_bounds = array<i64: 2>, scalar_prefetch = 0 : i64, scratch_operands = 0 : i64, tpu.core_type = #tpu.core_type<tc>, window_params = [{transform_indices = @transform_0, window_bounds = array<i64: 2>}, {transform_indices = @transform_1, window_bounds = array<i64: 1>}, {transform_indices = @transform_2, window_bounds = array<i64: 8, 128>}, {pipeline_mode = #tpu.pipeline_mode<synchronous>, transform_indices = @transform_3, window_bounds = array<i64: 128, 128>}, {pipeline_mode = #tpu.pipeline_mode<synchronous>, transform_indices = @transform_4, window_bounds = array<i64: 1, 128>}, {pipeline_mode = #tpu.pipeline_mode<synchronous>, transform_indices = @transform_5, window_bounds = array<i64: 128, 128>}, {pipeline_mode = #tpu.pipeline_mode<synchronous>, transform_indices = @transform_6, window_bounds = array<i64: 1, 128>}, {transform_indices = @transform_7, window_bounds = array<i64: 8, 128>}]} {
    %c0 = arith.constant 0 : index
    %c0_0 = arith.constant 0 : index
    %0 = vector.load %arg3[%c0, %c0_0] : memref<8x128xf32, #tpu.memory_space<vmem>>, vector<8x128xf32>
    %c0_1 = arith.constant 0 : index
    %1 = memref.load %arg1[%c0_1] : memref<2xi32, #tpu.memory_space<smem>>
    %c1 = arith.constant 1 : index
    %2 = memref.load %arg1[%c1] : memref<2xi32, #tpu.memory_space<smem>>
    %c8_i32 = arith.constant 8 : i32
    %3 = arith.muli %arg0, %c8_i32 : i32
    %4 = tpu.iota {dimensions = array<i32: 0>} : vector<8x1xi32>
    %5 = tpu.iota {dimensions = array<i32: 1>} : vector<1x128xi32>
    %6 = vector.broadcast %3 : i32 to vector<8x1xi32>
    %7 = arith.addi %4, %6 : vector<8x1xi32>
    %c128_i32 = arith.constant 128 : i32
    %8 = vector.broadcast %c128_i32 : i32 to vector<8x1xi32>
    %9 = arith.muli %7, %8 : vector<8x1xi32>
    %10 = vector.broadcast %9 : vector<8x1xi32> to vector<8x128xi32>
    %11 = vector.broadcast %5 : vector<1x128xi32> to vector<8x128xi32>
    %12 = arith.addi %10, %11 : vector<8x128xi32>
    %13 = vector.broadcast %1 : i32 to vector<8x128xi32>
    %14 = arith.xori %12, %13 : vector<8x128xi32>
    %c-1640531535_i32 = arith.constant -1640531535 : i32
    %15 = vector.broadcast %c-1640531535_i32 : i32 to vector<8x128xi32>
    %16 = arith.muli %14, %15 : vector<8x128xi32>
    %c15_i32 = arith.constant 15 : i32
    %17 = vector.broadcast %c15_i32 : i32 to vector<8x128xi32>
    %18 = arith.shrui %16, %17 : vector<8x128xi32>
    %19 = arith.xori %16, %18 : vector<8x128xi32>
    %c-2048144789_i32 = arith.constant -2048144789 : i32
    %20 = vector.broadcast %c-2048144789_i32 : i32 to vector<8x128xi32>
    %21 = arith.muli %19, %20 : vector<8x128xi32>
    %c8_i32_2 = arith.constant 8 : i32
    %22 = vector.broadcast %c8_i32_2 : i32 to vector<8x128xi32>
    %23 = arith.shrui %21, %22 : vector<8x128xi32>
    %24 = vector.broadcast %2 : i32 to vector<8x128xi32>
    %25 = arith.cmpi sgt, %23, %24 : vector<8x128xi32>
    %cst = arith.constant 0.000000e+00 : f32
    %26 = vector.broadcast %cst : f32 to vector<8x128xf32>
    %27 = arith.select %25, %0, %26 : vector<8x128xi1>, vector<8x128xf32>
    %28 = arith.truncf %27 : vector<8x128xf32> to vector<8x128xbf16>
    %c0_3 = arith.constant 0 : index
    %c0_4 = arith.constant 0 : index
    %29 = vector.load %arg4[%c0_3, %c0_4] : memref<128x128xbf16, #tpu.memory_space<vmem>>, vector<128x128xbf16>
    %cst_5 = arith.constant dense<0.000000e+00> : vector<8x128xf32>
    %30 = tpu.matmul %28, %29, %cst_5 {dimension_numbers = #tpu.dot_dimension_numbers<[1], [0], [0], [1], [0, 0, 1, 1], [], []>} : vector<8x128xbf16>, vector<128x128xbf16>, vector<8x128xf32> -> vector<8x128xf32>
    %c0_6 = arith.constant 0 : index
    %c0_7 = arith.constant 0 : index
    %31 = vector.load %arg5[%c0_6, %c0_7] : memref<1x128xf32, #tpu.memory_space<vmem>>, vector<1x128xf32>
    %32 = vector.broadcast %31 : vector<1x128xf32> to vector<8x128xf32>
    %33 = arith.addf %30, %32 : vector<8x128xf32>
    %c0_8 = arith.constant 0 : index
    %34 = memref.load %arg2[%c0_8] : memref<1xf32, #tpu.memory_space<smem>>
    %cst_9 = arith.constant 0.000000e+00 : f32
    %35 = vector.broadcast %cst_9 : f32 to vector<8x128xf32>
    %36 = arith.cmpf ogt, %33, %35 : vector<8x128xf32>
    %37 = vector.broadcast %34 : f32 to vector<8x128xf32>
    %38 = arith.mulf %37, %33 : vector<8x128xf32>
    %39 = arith.select %36, %33, %38 : vector<8x128xi1>, vector<8x128xf32>
    %40 = arith.truncf %39 : vector<8x128xf32> to vector<8x128xbf16>
    %c0_10 = arith.constant 0 : index
    %c0_11 = arith.constant 0 : index
    %41 = vector.load %arg6[%c0_10, %c0_11] : memref<128x128xbf16, #tpu.memory_space<vmem>>, vector<128x128xbf16>
    %cst_12 = arith.constant dense<0.000000e+00> : vector<8x128xf32>
    %42 = tpu.matmul %40, %41, %cst_12 {dimension_numbers = #tpu.dot_dimension_numbers<[1], [0], [0], [1], [0, 0, 1, 1], [], []>} : vector<8x128xbf16>, vector<128x128xbf16>, vector<8x128xf32> -> vector<8x128xf32>
    %c0_13 = arith.constant 0 : index
    %c0_14 = arith.constant 0 : index
    %43 = vector.load %arg7[%c0_13, %c0_14] : memref<1x128xf32, #tpu.memory_space<vmem>>, vector<1x128xf32>
    %44 = vector.broadcast %43 : vector<1x128xf32> to vector<8x128xf32>
    %45 = arith.addf %42, %44 : vector<8x128xf32>
    %c0_15 = arith.constant 0 : index
    %c0_16 = arith.constant 0 : index
    %46 = vector.load %arg8[%c0_15, %c0_16] : memref<8x128xf32, #tpu.memory_space<vmem>>, vector<8x128xf32>
    tpu.vector_store %arg8[%c0_15, %c0_16], %45 {strides = array<i32>} : memref<8x128xf32, #tpu.memory_space<vmem>>, vector<8x128xf32>,
    return
  }
  func.func @transform_0(%arg0: i32) -> i32 {
    %c0_i32 = arith.constant 0 : i32
    %c0_i32_0 = arith.constant 0 : i32
    return %c0_i32 : i32
  }
  func.func @transform_1(%arg0: i32) -> i32 {
    %c0_i32 = arith.constant 0 : i32
    %c0_i32_0 = arith.constant 0 : i32
    return %c0_i32 : i32
  }
  func.func @transform_2(%arg0: i32) -> (i32, i32) {
    %c0_i32 = arith.constant 0 : i32
    %c0_i32_0 = arith.constant 0 : i32
    return %arg0, %c0_i32 : i32, i32
  }
  func.func @transform_3(%arg0: i32) -> (i32, i32) {
    %c0_i32 = arith.constant 0 : i32
    %c0_i32_0 = arith.constant 0 : i32
    %c0_i32_1 = arith.constant 0 : i32
    return %c0_i32, %c0_i32_0 : i32, i32
  }
  func.func @transform_4(%arg0: i32) -> (i32, i32) {
    %c0_i32 = arith.constant 0 : i32
    %c0_i32_0 = arith.constant 0 : i32
    %c0_i32_1 = arith.constant 0 : i32
    return %c0_i32, %c0_i32_0 : i32, i32
  }
  func.func @transform_5(%arg0: i32) -> (i32, i32) {
    %c0_i32 = arith.constant 0 : i32
    %c0_i32_0 = arith.constant 0 : i32
    %c0_i32_1 = arith.constant 0 : i32
    return %c0_i32, %c0_i32_0 : i32, i32
  }
  func.func @transform_6(%arg0: i32) -> (i32, i32) {
    %c0_i32 = arith.constant 0 : i32
    %c0_i32_0 = arith.constant 0 : i32
    %c0_i32_1 = arith.constant 0 : i32
    return %c0_i32, %c0_i32_0 : i32, i32
  }
  func.func @transform_7(%arg0: i32) -> (i32, i32) {
    %c0_i32 = arith.constant 0 : i32
    %c0_i32_0 = arith.constant 0 : i32
    return %arg0, %c0_i32 : i32, i32
  }
}

</mosaic_0001>

<llo_original>
// kernel: tpu_custom_call.1
$region0: #{tpu_custom_call.1}
  #allocation0 [shape = 'u32[]', space=smem, size = 0x4, offset = 0x4, fixed_abs, tag = 'smem constant byte address 0x4 - core index']
  #allocation1 [shape = 'u32[72,128]{1,0:T(1,128)}', space=vmem, size = 0x9000, scoped, tag = 'internal scratch']
  #allocation2 [shape = 'f32[1]{0:T(128)S(6)}', space=smem, size = 0x200, scoped, tag = 'scoped memory for tpu_custom_call.1']
  %s0 = inlined_call_operand.vmem [shape: s32[2], index: 0, kind: input, shape index: {}]
  %s1 = inlined_call_operand.<no memory space> [shape: f32[1], index: 1, kind: input, shape index: {}]
  %s2 = inlined_call_operand.hbm [shape: f32[16,128], index: 2, kind: input, shape index: {}]
  %s3 = inlined_call_operand.hbm [shape: bf16[128,128], index: 3, kind: input, shape index: {}]
  %s4 = inlined_call_operand.vmem [shape: f32[1,128], index: 4, kind: input, shape index: {}]
  %s5 = inlined_call_operand.hbm [shape: bf16[128,128], index: 5, kind: input, shape index: {}]
  %s6 = inlined_call_operand.vmem [shape: f32[1,128], index: 6, kind: input, shape index: {}]
  %s7 = inlined_call_operand.hbm [shape: f32[16,128], index: 7, kind: output, shape index: {}]
  %s8 = sld [smem:[#allocation0]]
  $region77: #{tpu_custom_call.1} parent=0
    _
  %s10 = ssub.s32 1, %s8
  %s11 = scalar_select 0, %s10, %s8
  %12 = sst [smem:[#allocation2]] %s1
  $region1: #{tpu_custom_call.1} parent=0
    #allocation3 [shape = 'u8[512]{0}', space=smem, size = 0x200, scoped, tag = 'input window, operand 0, single buffered']
    #allocation4 [shape = 's32[2]{0}', space=sflag, size = 0x8, scoped, tag = 'scoped memory for tpu_custom_call.1']
    #allocation5 [shape = 's32[2]{0}', space=sflag, size = 0x8, scoped, tag = 'scoped memory for tpu_custom_call.1']
    #allocation6 [shape = 's32[2]{0}', space=sflag, size = 0x8, scoped, tag = 'scoped memory for tpu_custom_call.1']
    #allocation7 [shape = 'u8[8192]{0}', space=vmem, size = 0x2000, scoped, tag = 'input window, operand 2']
    #allocation8 [shape = 'u8[32768]{0}', space=vmem, size = 0x8000, scoped, tag = 'input window, operand 3, single buffered']
    #allocation9 [shape = 's32[1]{0}', space=sflag, size = 0x4, scoped, tag = 'scoped memory for tpu_custom_call.1']
    #allocation10 [shape = 'u8[32768]{0}', space=vmem, size = 0x8000, scoped, tag = 'input window, operand 5, single buffered']
    #allocation11 [shape = 'u8[8192]{0}', space=vmem, size = 0x2000, scoped, tag = 'output window, operand 0']
    %13 = vsyncpa [#allocation6], 0
    %14 = vsyncpa [#allocation4], 0
    %s15 = scalar_lea.sflag [#allocation4], 1
    %16 = vsyncpa %s15, 0
    %17 = vsyncpa [#allocation9], 0
    %18 = vsyncpa [#allocation5], 0
    %s19 = scalar_lea.sflag [#allocation5], 1
    %20 = vsyncpa %s19, 0
    loop: start=0, step=1, limit=4
    $region2: #{tpu_custom_call.1} parent=1 // loop_pre_header
      _
    $region3: #{tpu_custom_call.1} parent=1 // loop_header
      %s22 = sphi 0, %s26
      %p23 = scmp.ge.s32.totalorder %s22, 4
      %s30 = sphi 0, %s30
      %s32 = sphi 0, %s30
      %s33 = sphi 0, %s32
      %s47 = sphi 0, %s33
      %s51 = sphi 0, %s51
      %s53 = sphi 0, %s51
      %s54 = sphi 0, %s53
      %s68 = sphi 0, %s54
      %s74 = sphi 0, %s76
      %s77 = sphi 0, %s74
      %s78 = sphi 0, %s77
      %s94 = sphi 0, %s78
      %s98 = sphi 0, %s98
      %s100 = sphi 0, %s98
      %s101 = sphi 0, %s100
      %s115 = sphi 0, %s101
      %s119 = sphi 0, %s119
      %s121 = sphi 0, %s119
      %s122 = sphi 0, %s121
      %s136 = sphi 0, %s122
      %s140 = sphi 0, %s140
      %s142 = sphi 0, %s140
      %s143 = sphi 0, %s142
      %s157 = sphi 0, %s143
      %s161 = sphi 0, %s161
      %s163 = sphi 0, %s161
      %s164 = sphi 0, %s163
      %s178 = sphi 0, %s164
      %s184 = sphi 0, %s186
      %s187 = sphi 0, %s184
      %s188 = sphi 0, %s187
      %s204 = sphi 0, %s188
    $region4: #{tpu_custom_call.1} parent=1 // loop_header_branch
      %25 = sbr.rel (%p23) target = $region8
    $region5: #{tpu_custom_call.1} parent=1 // loop_body
      %s27 = ssub.s32 %s22, 1
      %s28 = ssub.s32 %s22, 2
      %s29 = sadd.s32 %s22, 1
      %s31 = sadd.s32 %s30, 1
      %p34 = scmp.eq.s32.totalorder %s22, 1
      %p35 = scmp.ne.s32.totalorder %s30, %s32
      %p36 = scmp.eq.s32.totalorder %s22, 0
      %p37 = por %p35, %p36
      %p38 = scmp.ne.s32.totalorder %s30, %s32
      %p39 = scmp.eq.s32.totalorder %s27, 1
      %p40 = por %p38, %p39
      %p41 = scmp.ne.s32.totalorder %s32, %s33
      %p42 = scmp.eq.s32.totalorder %s27, 0
      %p43 = por %p41, %p42
      %p44 = scmp.ne.s32.totalorder %s32, %s33
      %p45 = scmp.eq.s32.totalorder %s28, 1
      %p46 = por %p44, %p45
      %p48 = scmp.ne.s32.totalorder %s33, %s47
      %p49 = scmp.eq.s32.totalorder %s28, 0
      %p50 = por %p48, %p49
      %s52 = sadd.s32 %s51, 1
      %p55 = scmp.eq.s32.totalorder %s22, 1
      %p56 = scmp.ne.s32.totalorder %s51, %s53
      %p57 = scmp.eq.s32.totalorder %s22, 0
      %p58 = por %p56, %p57
      %p59 = scmp.ne.s32.totalorder %s51, %s53
      %p60 = scmp.eq.s32.totalorder %s27, 1
      %p61 = por %p59, %p60
      %p62 = scmp.ne.s32.totalorder %s53, %s54
      %p63 = scmp.eq.s32.totalorder %s27, 0
      %p64 = por %p62, %p63
      %p65 = scmp.ne.s32.totalorder %s53, %s54
      %p66 = scmp.eq.s32.totalorder %s28, 1
      %p67 = por %p65, %p66
      %p69 = scmp.ne.s32.totalorder %s54, %s68
      %p70 = scmp.eq.s32.totalorder %s28, 0
      %p71 = por %p69, %p70
      %s72 = ssub.s32 %s22, %s29
      %p73 = scmp.eq.s32.totalorder %s72, 0
      %s75 = sadd.s32 %s74, 1
      %s76 = scalar_select %p73, %s74, %s75
      %p79 = pneg %p73
      %p80 = scmp.eq.s32.totalorder %s22, 1
      %p81 = por %p79, %p80
      %p82 = scmp.ne.s32.totalorder %s74, %s77
      %p83 = scmp.eq.s32.totalorder %s22, 0
      %p84 = por %p82, %p83
      %p85 = scmp.ne.s32.totalorder %s74, %s77
      %p86 = scmp.eq.s32.totalorder %s27, 1
      %p87 = por %p85, %p86
      %p88 = scmp.ne.s32.totalorder %s77, %s78
      %p89 = scmp.eq.s32.totalorder %s27, 0
      %p90 = por %p88, %p89
      %p91 = scmp.ne.s32.totalorder %s77, %s78
      %p92 = scmp.eq.s32.totalorder %s28, 1
      %p93 = por %p91, %p92
      %p95 = scmp.ne.s32.totalorder %s78, %s94
      %p96 = scmp.eq.s32.totalorder %s28, 0
      %p97 = por %p95, %p96
      %s99 = sadd.s32 %s98, 1
      %p102 = scmp.eq.s32.totalorder %s22, 1
      %p103 = scmp.ne.s32.totalorder %s98, %s100
      %p104 = scmp.eq.s32.totalorder %s22, 0
      %p105 = por %p103, %p104
      %p106 = scmp.ne.s32.totalorder %s98, %s100
      %p107 = scmp.eq.s32.totalorder %s27, 1
      %p108 = por %p106, %p107
      %p109 = scmp.ne.s32.totalorder %s100, %s101
      %p110 = scmp.eq.s32.totalorder %s27, 0
      %p111 = por %p109, %p110
      %p112 = scmp.ne.s32.totalorder %s100, %s101
      %p113 = scmp.eq.s32.totalorder %s28, 1
      %p114 = por %p112, %p113
      %p116 = scmp.ne.s32.totalorder %s101, %s115
      %p117 = scmp.eq.s32.totalorder %s28, 0
      %p118 = por %p116, %p117
      %s120 = sadd.s32 %s119, 1
      %p123 = scmp.eq.s32.totalorder %s22, 1
      %p124 = scmp.ne.s32.totalorder %s119, %s121
      %p125 = scmp.eq.s32.totalorder %s22, 0
      %p126 = por %p124, %p125
      %p127 = scmp.ne.s32.totalorder %s119, %s121
      %p128 = scmp.eq.s32.totalorder %s27, 1
      %p129 = por %p127, %p128
      %p130 = scmp.ne.s32.totalorder %s121, %s122
      %p131 = scmp.eq.s32.totalorder %s27, 0
      %p132 = por %p130, %p131
      %p133 = scmp.ne.s32.totalorder %s121, %s122
      %p134 = scmp.eq.s32.totalorder %s28, 1
      %p135 = por %p133, %p134
      %p137 = scmp.ne.s32.totalorder %s122, %s136
      %p138 = scmp.eq.s32.totalorder %s28, 0
      %p139 = por %p137, %p138
      %s141 = sadd.s32 %s140, 1
      %p144 = scmp.eq.s32.totalorder %s22, 1
      %p145 = scmp.ne.s32.totalorder %s140, %s142
      %p146 = scmp.eq.s32.totalorder %s22, 0
      %p147 = por %p145, %p146
      %p148 = scmp.ne.s32.totalorder %s140, %s142
      %p149 = scmp.eq.s32.totalorder %s27, 1
      %p150 = por %p148, %p149
      %p151 = scmp.ne.s32.totalorder %s142, %s143
      %p152 = scmp.eq.s32.totalorder %s27, 0
      %p153 = por %p151, %p152
      %p154 = scmp.ne.s32.totalorder %s142, %s143
      %p155 = scmp.eq.s32.totalorder %s28, 1
      %p156 = por %p154, %p155
      %p158 = scmp.ne.s32.totalorder %s143, %s157
      %p159 = scmp.eq.s32.totalorder %s28, 0
      %p160 = por %p158, %p159
      %s162 = sadd.s32 %s161, 1
      %p165 = scmp.eq.s32.totalorder %s22, 1
      %p166 = scmp.ne.s32.totalorder %s161, %s163
      %p167 = scmp.eq.s32.totalorder %s22, 0
      %p168 = por %p166, %p167
      %p169 = scmp.ne.s32.totalorder %s161, %s163
      %p170 = scmp.eq.s32.totalorder %s27, 1
      %p171 = por %p169, %p170
      %p172 = scmp.ne.s32.totalorder %s163, %s164
      %p173 = scmp.eq.s32.totalorder %s27, 0
      %p174 = por %p172, %p173
      %p175 = scmp.ne.s32.totalorder %s163, %s164
      %p176 = scmp.eq.s32.totalorder %s28, 1
      %p177 = por %p175, %p176
      %p179 = scmp.ne.s32.totalorder %s164, %s178
      %p180 = scmp.eq.s32.totalorder %s28, 0
      %p181 = por %p179, %p180
      %s182 = ssub.s32 %s22, %s29
      %p183 = scmp.eq.s32.totalorder %s182, 0
      %s185 = sadd.s32 %s184, 1
      %s186 = scalar_select %p183, %s184, %s185
      %p189 = pneg %p183
      %p190 = scmp.eq.s32.totalorder %s22, 1
      %p191 = por %p189, %p190
      %p192 = scmp.ne.s32.totalorder %s184, %s187
      %p193 = scmp.eq.s32.totalorder %s22, 0
      %p194 = por %p192, %p193
      %p195 = scmp.ne.s32.totalorder %s184, %s187
      %p196 = scmp.eq.s32.totalorder %s27, 1
      %p197 = por %p195, %p196
      %p198 = scmp.ne.s32.totalorder %s187, %s188
      %p199 = scmp.eq.s32.totalorder %s27, 0
      %p200 = por %p198, %p199
      %p201 = scmp.ne.s32.totalorder %s187, %s188
      %p202 = scmp.eq.s32.totalorder %s28, 1
      %p203 = por %p201, %p202
      %p205 = scmp.ne.s32.totalorder %s188, %s204
      %p206 = scmp.eq.s32.totalorder %s28, 0
      %p207 = por %p205, %p206
      %p208 = scmp.le.s32.totalorder 1, %s22
      %p209 = scmp.lt.s32.totalorder %s22, 3
      %p210 = pnand %p208, %p209
      %p211 = pneg %p210
      // Predicated region
      $region9: #{tpu_custom_call.1} parent=5 // pred_check
        _
      $region10: #{tpu_custom_call.1} parent=5 // pred_check_branch
        %213 = sbr.rel (%p210) target = $region12
      $region11: #{tpu_custom_call.1} parent=5 // pred_region
        %s214 = ssub.s32 %s22, 1
        // Predicated region
        $region13: #{tpu_custom_call.1} parent=11 // pred_check
          %p215 = pneg %p43
        $region14: #{tpu_custom_call.1} parent=11 // pred_check_branch
          %217 = sbr.rel (%p215) target = $region16
        $region15: #{tpu_custom_call.1} parent=11 // pred_region
          %219 = vsyncadd [#allocation6], 0
          %s221 = sshll.u32 %s0, 4
          %s222 = int_to_ptr.vmem [resolvable:$true] %s221
          %224 = dma.vmem_to_smem %s222, 16, [#allocation3], [#allocation6]
        $region16: #{tpu_custom_call.1} parent=11 // pred_fallthru
          _
        // Predicated region
        $region17: #{tpu_custom_call.1} parent=11 // pred_check
          %p225 = pneg %p64
        $region18: #{tpu_custom_call.1} parent=11 // pred_check_branch
          %227 = sbr.rel (%p225) target = $region20
        $region19: #{tpu_custom_call.1} parent=11 // pred_region
          _
        $region20: #{tpu_custom_call.1} parent=11 // pred_fallthru
          _
        // Predicated region
        $region21: #{tpu_custom_call.1} parent=11 // pred_check
          %p228 = pneg %p111
        $region22: #{tpu_custom_call.1} parent=11 // pred_check_branch
          %230 = sbr.rel (%p228) target = $region24
        $region23: #{tpu_custom_call.1} parent=11 // pred_region
          %232 = vsyncadd [#allocation9], 0
          %s233 = sshll.u32 %s3, 4
          %s234 = int_to_ptr.hbm [resolvable:$true] %s233
          %s235 = sshll.u32 [#allocation8], 4
          %s236 = int_to_ptr.vmem [resolvable:$true] %s235
          %241 = dma.hbm_to_vmem [thread:$0]  %s234, 1024, %s236, [#allocation9], 64, 64, 4
        $region24: #{tpu_custom_call.1} parent=11 // pred_fallthru
          _
        // Predicated region
        $region25: #{tpu_custom_call.1} parent=11 // pred_check
          %p242 = pneg %p132
        $region26: #{tpu_custom_call.1} parent=11 // pred_check_branch
          %244 = sbr.rel (%p242) target = $region28
        $region27: #{tpu_custom_call.1} parent=11 // pred_region
          _
        $region28: #{tpu_custom_call.1} parent=11 // pred_fallthru
          _
        // Predicated region
        $region29: #{tpu_custom_call.1} parent=11 // pred_check
          %p245 = pneg %p153
        $region30: #{tpu_custom_call.1} parent=11 // pred_check_branch
          %247 = sbr.rel (%p245) target = $region32
        $region31: #{tpu_custom_call.1} parent=11 // pred_region
          %249 = vsyncadd [#allocation9], 0
          %s250 = sshll.u32 %s5, 4
          %s251 = int_to_ptr.hbm [resolvable:$true] %s250
          %s252 = sshll.u32 [#allocation10], 4
          %s253 = int_to_ptr.vmem [resolvable:$true] %s252
          %258 = dma.hbm_to_vmem [thread:$0]  %s251, 1024, %s253, [#allocation9], 64, 64, 4
        $region32: #{tpu_custom_call.1} parent=11 // pred_fallthru
          _
        // Predicated region
        $region33: #{tpu_custom_call.1} parent=11 // pred_check
          %p259 = pneg %p174
        $region34: #{tpu_custom_call.1} parent=11 // pred_check_branch
          %261 = sbr.rel (%p259) target = $region36
        $region35: #{tpu_custom_call.1} parent=11 // pred_region
          _
        $region36: #{tpu_custom_call.1} parent=11 // pred_fallthru
          _
      $region12: #{tpu_custom_call.1} parent=5 // pred_fallthru
        _
      %p262 = scmp.lt.s32.totalorder %s22, 2
      // Predicated region
      $region37: #{tpu_custom_call.1} parent=5 // pred_check
        %p263 = pneg %p262
      $region38: #{tpu_custom_call.1} parent=5 // pred_check_branch
        %265 = sbr.rel (%p263) target = $region40
      $region39: #{tpu_custom_call.1} parent=5 // pred_region
        // Predicated region
        $region41: #{tpu_custom_call.1} parent=39 // pred_check
          %p266 = pneg %p84
        $region42: #{tpu_custom_call.1} parent=39 // pred_check_branch
          %268 = sbr.rel (%p266) target = $region44
        $region43: #{tpu_custom_call.1} parent=39 // pred_region
          %s269 = sand.u32 %s74, 1
          %s270 = scalar_lea.sflag [#allocation4], %s269
          %s271 = sand.u32 %s74, 1
          %s272 = smul.addr %s271, 8
          %s273 = scalar_lea.vmem [#allocation7], %s272
          %275 = vsyncadd %s270, 0
          %s276 = smul.addr %s22, 8
          %s277 = scalar_lea.hbm %s2, %s276
          %s279 = sshll.u32 %s277, 4
          %s280 = int_to_ptr.hbm [resolvable:$true] %s279
          %s281 = sshll.u32 %s273, 4
          %s282 = int_to_ptr.vmem [resolvable:$true] %s281
          %284 = dma.hbm_to_vmem [thread:$0]  %s280, 128, %s282, %s270
        $region44: #{tpu_custom_call.1} parent=39 // pred_fallthru
          _
      $region40: #{tpu_custom_call.1} parent=5 // pred_fallthru
        _
      %p285 = scmp.le.s32.totalorder 1, %s22
      %p286 = scmp.lt.s32.totalorder %s22, 3
      %p287 = pnand %p285, %p286
      %p288 = pneg %p287
      // Predicated region
      $region45: #{tpu_custom_call.1} parent=5 // pred_check
        _
      $region46: #{tpu_custom_call.1} parent=5 // pred_check_branch
        %290 = sbr.rel (%p287) target = $region48
      $region47: #{tpu_custom_call.1} parent=5 // pred_region
        %s291 = ssub.s32 %s22, 1
        // Predicated region
        $region49: #{tpu_custom_call.1} parent=47 // pred_check
          %p292 = pneg %p43
        $region50: #{tpu_custom_call.1} parent=47 // pred_check_branch
          %294 = sbr.rel (%p292) target = $region52
        $region51: #{tpu_custom_call.1} parent=47 // pred_region
          %296 = dma.done [#allocation6], 16
        $region52: #{tpu_custom_call.1} parent=47 // pred_fallthru
          _
        %s297 = sand.u32 %s77, 1
        %s298 = scalar_lea.sflag [#allocation4], %s297
        %s299 = sand.u32 %s77, 1
        %s300 = smul.addr %s299, 8
        %s301 = scalar_lea.vmem [#allocation7], %s300
        // Predicated region
        $region53: #{tpu_custom_call.1} parent=47 // pred_check
          %p302 = pneg %p90
        $region54: #{tpu_custom_call.1} parent=47 // pred_check_branch
          %304 = sbr.rel (%p302) target = $region56
        $region55: #{tpu_custom_call.1} parent=47 // pred_region
          %306 = dma.done %s298, 128
        $region56: #{tpu_custom_call.1} parent=47 // pred_fallthru
          _
        // Predicated region
        $region57: #{tpu_custom_call.1} parent=47 // pred_check
          %p307 = pneg %p111
        $region58: #{tpu_custom_call.1} parent=47 // pred_check_branch
          %309 = sbr.rel (%p307) target = $region60
        $region59: #{tpu_custom_call.1} parent=47 // pred_region
          %311 = dma.done [#allocation9], 1024
        $region60: #{tpu_custom_call.1} parent=47 // pred_fallthru
          _
        // Predicated region
        $region61: #{tpu_custom_call.1} parent=47 // pred_check
          %p312 = pneg %p153
        $region62: #{tpu_custom_call.1} parent=47 // pred_check_branch
          %314 = sbr.rel (%p312) target = $region64
        $region63: #{tpu_custom_call.1} parent=47 // pred_region
          %316 = dma.done [#allocation9], 1024
        $region64: #{tpu_custom_call.1} parent=47 // pred_fallthru
          _
        %317 = sfence
        %p318 = pneg %p43
        %p319 = pneg %p40
        %p320 = pneg %p64
        %p321 = pneg %p61
        %s322 = sand.u32 %s77, 1
        %s323 = scalar_lea.sflag [#allocation4], %s322
        %s324 = sand.u32 %s77, 1
        %s325 = smul.addr %s324, 8
        %s326 = scalar_lea.vmem [#allocation7], %s325
        %p327 = pneg %p90
        %p328 = pneg %p87
        %p329 = pneg %p111
        %p330 = pneg %p108
        %p331 = pneg %p132
        %p332 = pneg %p129
        %p333 = pneg %p153
        %p334 = pneg %p150
        %p335 = pneg %p174
        %p336 = pneg %p171
        %p337 = pneg %p200
        %p338 = pneg %p197
        %s339 = sand.u32 %s187, 1
        %s340 = scalar_lea.sflag [#allocation5], %s339
        %s341 = sand.u32 %s187, 1
        %s342 = smul.addr %s341, 8
        %s343 = scalar_lea.vmem [#allocation11], %s342
        %v344 = vld [vmem:[%s301] sm:$0xff]
        %s345 = sld [smem:[#allocation3]]
        %s346 = sld [smem:[#allocation3 + $0x1]]
        %s347 = smul.u32 %s27, 8
        %v348 = vlaneseq
        %v349 = vshrl.u32 %v348, 7
        %v350 = vlaneseq
        %v351 = vand.u32 %v350, 127
        %v352 = vstv %s347
        %v353 = vadd.s32 %v349, %v352
        %v354 = vmul.u32 %v353, 128
        %v355 = vadd.s32 %v354, %v351
        %v356 = vstv %s345
        %v357 = vxor.u32 %v355, %v356
        %v358 = vmul.u32 %v357, 2654435761
        %v359 = vshrl.u32 %v358, 15
        %v360 = vxor.u32 %v358, %v359
        %v361 = vmul.u32 %v360, 2246822507
        %v362 = vshrl.u32 %v361, 8
        %v363 = vstv %s346
        %vm364 = vcmp.gt.s32.totalorder %v362, %v363
        %v365 = vsel %vm364, %v344, 0.0
        %v366 = vpack.c.bf16 %v365, %v365
        %v367 = vld [vmem:[#allocation8] sm:$0xf]
        %v368 = vld [vmem:[#allocation8 + $0x4] sm:$0xf]
        %v369 = vld [vmem:[#allocation8 + $0x8] sm:$0xf]
        %v370 = vld [vmem:[#allocation8 + $0xc] sm:$0xf]
        %v371 = vld [vmem:[#allocation8 + $0x10] sm:$0xf]
        %v372 = vld [vmem:[#allocation8 + $0x14] sm:$0xf]
        %v373 = vld [vmem:[#allocation8 + $0x18] sm:$0xf]
        %v374 = vld [vmem:[#allocation8 + $0x1c] sm:$0xf]
        %v375 = vld [vmem:[#allocation8 + $0x20] sm:$0xf]
        %v376 = vld [vmem:[#allocation8 + $0x24] sm:$0xf]
        %v377 = vld [vmem:[#allocation8 + $0x28] sm:$0xf]
        %v378 = vld [vmem:[#allocation8 + $0x2c] sm:$0xf]
        %v379 = vld [vmem:[#allocation8 + $0x30] sm:$0xf]
        %v380 = vld [vmem:[#allocation8 + $0x34] sm:$0xf]
        %v381 = vld [vmem:[#allocation8 + $0x38] sm:$0xf]
        %v382 = vld [vmem:[#allocation8 + $0x3c] sm:$0xf]
        %v383 = vld [vmem:[%s4] sm:$0x1]
        %v385 = vperm.slane %v383, 0
        %v403 = vunpack.c.l.b16 %v367
        %v404 = vunpack.c.l.b16 %v368
        %v405 = vunpack.c.l.b16 %v369
        %v406 = vunpack.c.l.b16 %v370
        %v407 = vunpack.c.l.b16 %v371
        %v408 = vunpack.c.l.b16 %v372
        %v409 = vunpack.c.l.b16 %v373
        %v410 = vunpack.c.l.b16 %v374
        %v411 = vunpack.c.l.b16 %v375
        %v412 = vunpack.c.l.b16 %v376
        %v413 = vunpack.c.l.b16 %v377
        %v414 = vunpack.c.l.b16 %v378
        %v415 = vunpack.c.l.b16 %v379
        %v416 = vunpack.c.l.b16 %v380
        %v417 = vunpack.c.l.b16 %v381
        %v418 = vunpack.c.l.b16 %v382
        %v419 = vpack.c.b16 %v404, %v403
        %v420 = vpack.c.b16 %v406, %v405
        %v421 = vpack.c.b16 %v408, %v407
        %v422 = vpack.c.b16 %v410, %v409
        %v423 = vpack.c.b16 %v412, %v411
        %v424 = vpack.c.b16 %v414, %v413
        %v425 = vpack.c.b16 %v416, %v415
        %v426 = vpack.c.b16 %v418, %v417
        %435 = vmatpush.bf16.msra.mxu0 %v426
        %436 = vmatpush.bf16.msra.mxu0 %v425
        %437 = vmatpush.bf16.msra.mxu0 %v424
        %438 = vmatpush.bf16.msra.mxu0 %v423
        %439 = vmatpush.bf16.msra.mxu0 %v422
        %440 = vmatpush.bf16.msra.mxu0 %v421
        %441 = vmatpush.bf16.msra.mxu0 %v420
        %442 = vmatpush.bf16.msra.mxu0 %v419
        %443 = vmatmul.bf16.gmra.mxu0 %v366
        %v444 = vpop.f32.mrf.mxu0
        %v445 = vadd.f32 %v385, %v444
        %v446 = vpop.f32.mrf.mxu0
        %447 = vdwg.mxu0
        %s448 = sld [smem:[#allocation2]]
        %vm449 = vcmp.gt.f32.partialorder %v445, 0.0
        %v450 = vstv %s448
        %v451 = vmul.f32 %v450, %v445
        %v452 = vsel %vm449, %v445, %v451
        %v453 = vpack.c.bf16 %v452, %v452
        %v454 = vld [vmem:[#allocation10] sm:$0xf]
        %v455 = vld [vmem:[#allocation10 + $0x4] sm:$0xf]
        %v456 = vld [vmem:[#allocation10 + $0x8] sm:$0xf]
        %v457 = vld [vmem:[#allocation10 + $0xc] sm:$0xf]
        %v458 = vld [vmem:[#allocation10 + $0x10] sm:$0xf]
        %v459 = vld [vmem:[#allocation10 + $0x14] sm:$0xf]
        %v460 = vld [vmem:[#allocation10 + $0x18] sm:$0xf]
        %v461 = vld [vmem:[#allocation10 + $0x1c] sm:$0xf]
        %v462 = vld [vmem:[#allocation10 + $0x20] sm:$0xf]
        %v463 = vld [vmem:[#allocation10 + $0x24] sm:$0xf]
        %v464 = vld [vmem:[#allocation10 + $0x28] sm:$0xf]
        %v465 = vld [vmem:[#allocation10 + $0x2c] sm:$0xf]
        %v466 = vld [vmem:[#allocation10 + $0x30] sm:$0xf]
        %v467 = vld [vmem:[#allocation10 + $0x34] sm:$0xf]
        %v468 = vld [vmem:[#allocation10 + $0x38] sm:$0xf]
        %v469 = vld [vmem:[#allocation10 + $0x3c] sm:$0xf]
        %v470 = vld [vmem:[%s6] sm:$0x1]
        %v472 = vperm.slane %v470, 0
        %v490 = vunpack.c.l.b16 %v454
        %v491 = vunpack.c.l.b16 %v455
        %v492 = vunpack.c.l.b16 %v456
        %v493 = vunpack.c.l.b16 %v457
        %v494 = vunpack.c.l.b16 %v458
        %v495 = vunpack.c.l.b16 %v459
        %v496 = vunpack.c.l.b16 %v460
        %v497 = vunpack.c.l.b16 %v461
        %v498 = vunpack.c.l.b16 %v462
        %v499 = vunpack.c.l.b16 %v463
        %v500 = vunpack.c.l.b16 %v464
        %v501 = vunpack.c.l.b16 %v465
        %v502 = vunpack.c.l.b16 %v466
        %v503 = vunpack.c.l.b16 %v467
        %v504 = vunpack.c.l.b16 %v468
        %v505 = vunpack.c.l.b16 %v469
        %v506 = vpack.c.b16 %v491, %v490
        %v507 = vpack.c.b16 %v493, %v492
        %v508 = vpack.c.b16 %v495, %v494
        %v509 = vpack.c.b16 %v497, %v496
        %v510 = vpack.c.b16 %v499, %v498
        %v511 = vpack.c.b16 %v501, %v500
        %v512 = vpack.c.b16 %v503, %v502
        %v513 = vpack.c.b16 %v505, %v504
        %522 = vmatpush.bf16.msra.mxu0 %v513
        %523 = vmatpush.bf16.msra.mxu0 %v512
        %524 = vmatpush.bf16.msra.mxu0 %v511
        %525 = vmatpush.bf16.msra.mxu0 %v510
        %526 = vmatpush.bf16.msra.mxu0 %v509
        %527 = vmatpush.bf16.msra.mxu0 %v508
        %528 = vmatpush.bf16.msra.mxu0 %v507
        %529 = vmatpush.bf16.msra.mxu0 %v506
        %530 = vmatmul.bf16.gmra.mxu0 %v453
        %v531 = vpop.f32.mrf.mxu0
        %v532 = vadd.f32 %v472, %v531
        %v533 = vpop.f32.mrf.mxu0
        %534 = vdwg.mxu0
        %535 = vst [vmem:[%s343] sm:$0xff] %v532
        %s536 = sand.u32 %s187, 1
        %s537 = scalar_lea.sflag [#allocation5], %s536
        %s538 = sand.u32 %s187, 1
        %s539 = smul.addr %s538, 8
        %s540 = scalar_lea.vmem [#allocation11], %s539
        // Predicated region
        $region65: #{tpu_custom_call.1} parent=47 // pred_check
          %p541 = pneg %p197
        $region66: #{tpu_custom_call.1} parent=47 // pred_check_branch
          %543 = sbr.rel (%p541) target = $region68
        $region67: #{tpu_custom_call.1} parent=47 // pred_region
          %545 = vsyncadd %s537, 0
          %s546 = smul.addr %s27, 8
          %s547 = scalar_lea.hbm %s7, %s546
          %s549 = sshll.u32 %s540, 4
          %s550 = int_to_ptr.vmem [resolvable:$true] %s549
          %s551 = sshll.u32 %s547, 4
          %s552 = int_to_ptr.hbm [resolvable:$true] %s551
          %554 = dma.vmem_to_hbm [thread:$0]  %s550, 128, %s552, %s537
        $region68: #{tpu_custom_call.1} parent=47 // pred_fallthru
          _
      $region48: #{tpu_custom_call.1} parent=5 // pred_fallthru
        _
      %p555 = scmp.le.s32.totalorder 2, %s22
      // Predicated region
      $region69: #{tpu_custom_call.1} parent=5 // pred_check
        %p556 = pneg %p555
      $region70: #{tpu_custom_call.1} parent=5 // pred_check_branch
        %558 = sbr.rel (%p556) target = $region72
      $region71: #{tpu_custom_call.1} parent=5 // pred_region
        %s559 = ssub.s32 %s22, 2
        // Predicated region
        $region73: #{tpu_custom_call.1} parent=71 // pred_check
          %p560 = pneg %p203
        $region74: #{tpu_custom_call.1} parent=71 // pred_check_branch
          %562 = sbr.rel (%p560) target = $region76
        $region75: #{tpu_custom_call.1} parent=71 // pred_region
          %s563 = sand.u32 %s188, 1
          %s564 = scalar_lea.sflag [#allocation5], %s563
          %s565 = sand.u32 %s188, 1
          %s566 = smul.addr %s565, 8
          %s567 = scalar_lea.vmem [#allocation11], %s566
          %569 = dma.done %s564, 128
        $region76: #{tpu_custom_call.1} parent=71 // pred_fallthru
          _
      $region72: #{tpu_custom_call.1} parent=5 // pred_fallthru
        _
    $region6: #{tpu_custom_call.1} parent=1 // loop_footer
      %s26 = sadd.s32 1, %s22
    $region7: #{tpu_custom_call.1} parent=1 // loop_footer_branch
      %21 = sbr.rel target = $region3
    $region8: #{tpu_custom_call.1} parent=1 // loop_exit
      _
    %570 = vsyncpa [#allocation4], 1
    %s571 = scalar_lea.sflag [#allocation4], 1
    %572 = vsyncpa %s571, 1
    %573 = vsyncpa [#allocation9], 1
    %574 = vsyncpa [#allocation5], 1
    %s575 = scalar_lea.sflag [#allocation5], 1
    %576 = vsyncpa %s575, 1
    %577 = vsyncpa [#allocation6], 1
    %s578 = scalar_lea.sflag [#allocation6], 1
    %579 = vsyncpa %s578, 1

// kernel: tpu_custom_call.1
$region0: #{tpu_custom_call.1}
  #allocation0 [shape = 'u32[]', space=smem, size = 0x4, offset = 0x4, fixed_abs, tag = 'smem constant byte address 0x4 - core index']
  #allocation1 [shape = 'u32[72,128]{1,0:T(1,128)}', space=vmem, size = 0x9000, scoped, tag = 'internal scratch']
  #allocation2 [shape = 'f32[1]{0:T(128)S(6)}', space=smem, size = 0x200, scoped, tag = 'scoped memory for tpu_custom_call.1']
  %s0 = inlined_call_operand.vmem [shape: s32[2], index: 0, kind: input, shape index: {}]
  %s1 = inlined_call_operand.<no memory space> [shape: f32[1], index: 1, kind: input, shape index: {}]
  %s2 = inlined_call_operand.hbm [shape: f32[16,128], index: 2, kind: input, shape index: {}]
  %s3 = inlined_call_operand.hbm [shape: bf16[128,128], index: 3, kind: input, shape index: {}]
  %s4 = inlined_call_operand.vmem [shape: f32[1,128], index: 4, kind: input, shape index: {}]
  %s5 = inlined_call_operand.hbm [shape: bf16[128,128], index: 5, kind: input, shape index: {}]
  %s6 = inlined_call_operand.vmem [shape: f32[1,128], index: 6, kind: input, shape index: {}]
  %s7 = inlined_call_operand.hbm [shape: f32[16,128], index: 7, kind: output, shape index: {}]
  %s8 = sld [smem:[#allocation0]]
  $region77: #{tpu_custom_call.1} parent=0
    _
  %s10 = ssub.s32 1, %s8
  %s11 = scalar_select 0, %s10, %s8
  %12 = sst [smem:[#allocation2]] %s1
  $region1: #{tpu_custom_call.1} parent=0
    #allocation3 [shape = 'u8[512]{0}', space=smem, size = 0x200, scoped, tag = 'input window, operand 0, single buffered']
    #allocation4 [shape = 's32[2]{0}', space=sflag, size = 0x8, scoped, tag = 'scoped memory for tpu_custom_call.1']
    #allocation5 [shape = 's32[2]{0}', space=sflag, size = 0x8, scoped, tag = 'scoped memory for tpu_custom_call.1']
    #allocation6 [shape = 's32[2]{0}', space=sflag, size = 0x8, scoped, tag = 'scoped memory for tpu_custom_call.1']
    #allocation7 [shape = 'u8[8192]{0}', space=vmem, size = 0x2000, scoped, tag = 'input window, operand 2']
    #allocation8 [shape = 'u8[32768]{0}', space=vmem, size = 0x8000, scoped, tag = 'input window, operand 3, single buffered']
    #allocation9 [shape = 's32[1]{0}', space=sflag, size = 0x4, scoped, tag = 'scoped memory for tpu_custom_call.1']
    #allocation10 [shape = 'u8[32768]{0}', space=vmem, size = 0x8000, scoped, tag = 'input window, operand 5, single buffered']
    #allocation11 [shape = 'u8[8192]{0}', space=vmem, size = 0x2000, scoped, tag = 'output window, operand 0']
    %13 = vsyncpa [#allocation6], 0
    %14 = vsyncpa [#allocation4], 0
    %s15 = scalar_lea.sflag [#allocation4], 1
    %16 = vsyncpa %s15, 0
    %17 = vsyncpa [#allocation9], 0
    %18 = vsyncpa [#allocation5], 0
    %s19 = scalar_lea.sflag [#allocation5], 1
    %20 = vsyncpa %s19, 0
    loop: start=0, step=1, limit=4
    $region2: #{tpu_custom_call.1} parent=1 // loop_pre_header
      _
    $region3: #{tpu_custom_call.1} parent=1 // loop_header
      %s22 = sphi 0, %s26
      %p23 = scmp.ge.s32.totalorder %s22, 4
      %s30 = sphi 0, %s30
      %s32 = sphi 0, %s30
      %s33 = sphi 0, %s32
      %s47 = sphi 0, %s33
      %s51 = sphi 0, %s51
      %s53 = sphi 0, %s51
      %s54 = sphi 0, %s53
      %s68 = sphi 0, %s54
      %s74 = sphi 0, %s76
      %s77 = sphi 0, %s74
      %s78 = sphi 0, %s77
      %s94 = sphi 0, %s78
      %s98 = sphi 0, %s98
      %s100 = sphi 0, %s98
      %s101 = sphi 0, %s100
      %s115 = sphi 0, %s101
      %s119 = sphi 0, %s119
      %s121 = sphi 0, %s119
      %s122 = sphi 0, %s121
      %s136 = sphi 0, %s122
      %s140 = sphi 0, %s140
      %s142 = sphi 0, %s140
      %s143 = sphi 0, %s142
      %s157 = sphi 0, %s143
      %s161 = sphi 0, %s161
      %s163 = sphi 0, %s161
      %s164 = sphi 0, %s163
      %s178 = sphi 0, %s164
      %s184 = sphi 0, %s186
      %s187 = sphi 0, %s184
      %s188 = sphi 0, %s187
      %s204 = sphi 0, %s188
    $region4: #{tpu_custom_call.1} parent=1 // loop_header_branch
      %25 = sbr.rel (%p23) target = $region8
    $region5: #{tpu_custom_call.1} parent=1 // loop_body
      %s27 = ssub.s32 %s22, 1
      %s28 = ssub.s32 %s22, 2
      %s29 = sadd.s32 %s22, 1
      %s31 = sadd.s32 %s30, 1
      %p34 = scmp.eq.s32.totalorder %s22, 1
      %p35 = scmp.ne.s32.totalorder %s30, %s32
      %p36 = scmp.eq.s32.totalorder %s22, 0
      %p37 = por %p35, %p36
      %p38 = scmp.ne.s32.totalorder %s30, %s32
      %p39 = scmp.eq.s32.totalorder %s27, 1
      %p40 = por %p38, %p39
      %p41 = scmp.ne.s32.totalorder %s32, %s33
      %p42 = scmp.eq.s32.totalorder %s27, 0
      %p43 = por %p41, %p42
      %p44 = scmp.ne.s32.totalorder %s32, %s33
      %p45 = scmp.eq.s32.totalorder %s28, 1
      %p46 = por %p44, %p45
      %p48 = scmp.ne.s32.totalorder %s33, %s47
      %p49 = scmp.eq.s32.totalorder %s28, 0
      %p50 = por %p48, %p49
      %s52 = sadd.s32 %s51, 1
      %p55 = scmp.eq.s32.totalorder %s22, 1
      %p56 = scmp.ne.s32.totalorder %s51, %s53
      %p57 = scmp.eq.s32.totalorder %s22, 0
      %p58 = por %p56, %p57
      %p59 = scmp.ne.s32.totalorder %s51, %s53
      %p60 = scmp.eq.s32.totalorder %s27, 1
      %p61 = por %p59, %p60
      %p62 = scmp.ne.s32.totalorder %s53, %s54
      %p63 = scmp.eq.s32.totalorder %s27, 0
      %p64 = por %p62, %p63
      %p65 = scmp.ne.s32.totalorder %s53, %s54
      %p66 = scmp.eq.s32.totalorder %s28, 1
      %p67 = por %p65, %p66
      %p69 = scmp.ne.s32.totalorder %s54, %s68
      %p70 = scmp.eq.s32.totalorder %s28, 0
      %p71 = por %p69, %p70
      %s72 = ssub.s32 %s22, %s29
      %p73 = scmp.eq.s32.totalorder %s72, 0
      %s75 = sadd.s32 %s74, 1
      %s76 = scalar_select %p73, %s74, %s75
      %p79 = pneg %p73
      %p80 = scmp.eq.s32.totalorder %s22, 1
      %p81 = por %p79, %p80
      %p82 = scmp.ne.s32.totalorder %s74, %s77
      %p83 = scmp.eq.s32.totalorder %s22, 0
      %p84 = por %p82, %p83
      %p85 = scmp.ne.s32.totalorder %s74, %s77
      %p86 = scmp.eq.s32.totalorder %s27, 1
      %p87 = por %p85, %p86
      %p88 = scmp.ne.s32.totalorder %s77, %s78
      %p89 = scmp.eq.s32.totalorder %s27, 0
      %p90 = por %p88, %p89
      %p91 = scmp.ne.s32.totalorder %s77, %s78
      %p92 = scmp.eq.s32.totalorder %s28, 1
      %p93 = por %p91, %p92
      %p95 = scmp.ne.s32.totalorder %s78, %s94
      %p96 = scmp.eq.s32.totalorder %s28, 0
      %p97 = por %p95, %p96
      %s99 = sadd.s32 %s98, 1
      %p102 = scmp.eq.s32.totalorder %s22, 1
      %p103 = scmp.ne.s32.totalorder %s98, %s100
      %p104 = scmp.eq.s32.totalorder %s22, 0
      %p105 = por %p103, %p104
      %p106 = scmp.ne.s32.totalorder %s98, %s100
      %p107 = scmp.eq.s32.totalorder %s27, 1
      %p108 = por %p106, %p107
      %p109 = scmp.ne.s32.totalorder %s100, %s101
      %p110 = scmp.eq.s32.totalorder %s27, 0
      %p111 = por %p109, %p110
      %p112 = scmp.ne.s32.totalorder %s100, %s101
      %p113 = scmp.eq.s32.totalorder %s28, 1
      %p114 = por %p112, %p113
      %p116 = scmp.ne.s32.totalorder %s101, %s115
      %p117 = scmp.eq.s32.totalorder %s28, 0
      %p118 = por %p116, %p117
      %s120 = sadd.s32 %s119, 1
      %p123 = scmp.eq.s32.totalorder %s22, 1
      %p124 = scmp.ne.s32.totalorder %s119, %s121
      %p125 = scmp.eq.s32.totalorder %s22, 0
      %p126 = por %p124, %p125
      %p127 = scmp.ne.s32.totalorder %s119, %s121
      %p128 = scmp.eq.s32.totalorder %s27, 1
      %p129 = por %p127, %p128
      %p130 = scmp.ne.s32.totalorder %s121, %s122
      %p131 = scmp.eq.s32.totalorder %s27, 0
      %p132 = por %p130, %p131
      %p133 = scmp.ne.s32.totalorder %s121, %s122
      %p134 = scmp.eq.s32.totalorder %s28, 1
      %p135 = por %p133, %p134
      %p137 = scmp.ne.s32.totalorder %s122, %s136
      %p138 = scmp.eq.s32.totalorder %s28, 0
      %p139 = por %p137, %p138
      %s141 = sadd.s32 %s140, 1
      %p144 = scmp.eq.s32.totalorder %s22, 1
      %p145 = scmp.ne.s32.totalorder %s140, %s142
      %p146 = scmp.eq.s32.totalorder %s22, 0
      %p147 = por %p145, %p146
      %p148 = scmp.ne.s32.totalorder %s140, %s142
      %p149 = scmp.eq.s32.totalorder %s27, 1
      %p150 = por %p148, %p149
      %p151 = scmp.ne.s32.totalorder %s142, %s143
      %p152 = scmp.eq.s32.totalorder %s27, 0
      %p153 = por %p151, %p152
      %p154 = scmp.ne.s32.totalorder %s142, %s143
      %p155 = scmp.eq.s32.totalorder %s28, 1
      %p156 = por %p154, %p155
      %p158 = scmp.ne.s32.totalorder %s143, %s157
      %p159 = scmp.eq.s32.totalorder %s28, 0
      %p160 = por %p158, %p159
      %s162 = sadd.s32 %s161, 1
      %p165 = scmp.eq.s32.totalorder %s22, 1
      %p166 = scmp.ne.s32.totalorder %s161, %s163
      %p167 = scmp.eq.s32.totalorder %s22, 0
      %p168 = por %p166, %p167
      %p169 = scmp.ne.s32.totalorder %s161, %s163
      %p170 = scmp.eq.s32.totalorder %s27, 1
      %p171 = por %p169, %p170
      %p172 = scmp.ne.s32.totalorder %s163, %s164
      %p173 = scmp.eq.s32.totalorder %s27, 0
      %p174 = por %p172, %p173
      %p175 = scmp.ne.s32.totalorder %s163, %s164
      %p176 = scmp.eq.s32.totalorder %s28, 1
      %p177 = por %p175, %p176
      %p179 = scmp.ne.s32.totalorder %s164, %s178
      %p180 = scmp.eq.s32.totalorder %s28, 0
      %p181 = por %p179, %p180
      %s182 = ssub.s32 %s22, %s29
      %p183 = scmp.eq.s32.totalorder %s182, 0
      %s185 = sadd.s32 %s184, 1
      %s186 = scalar_select %p183, %s184, %s185
      %p189 = pneg %p183
      %p190 = scmp.eq.s32.totalorder %s22, 1
      %p191 = por %p189, %p190
      %p192 = scmp.ne.s32.totalorder %s184, %s187
      %p193 = scmp.eq.s32.totalorder %s22, 0
      %p194 = por %p192, %p193
      %p195 = scmp.ne.s32.totalorder %s184, %s187
      %p196 = scmp.eq.s32.totalorder %s27, 1
      %p197 = por %p195, %p196
      %p198 = scmp.ne.s32.totalorder %s187, %s188
      %p199 = scmp.eq.s32.totalorder %s27, 0
      %p200 = por %p198, %p199
      %p201 = scmp.ne.s32.totalorder %s187, %s188
      %p202 = scmp.eq.s32.totalorder %s28, 1
      %p203 = por %p201, %p202
      %p205 = scmp.ne.s32.totalorder %s188, %s204
      %p206 = scmp.eq.s32.totalorder %s28, 0
      %p207 = por %p205, %p206
      %p208 = scmp.le.s32.totalorder 1, %s22
      %p209 = scmp.lt.s32.totalorder %s22, 3
      %p210 = pnand %p208, %p209
      %p211 = pneg %p210
      // Predicated region
      $region9: #{tpu_custom_call.1} parent=5 // pred_check
        _
      $region10: #{tpu_custom_call.1} parent=5 // pred_check_branch
        %213 = sbr.rel (%p210) target = $region12
      $region11: #{tpu_custom_call.1} parent=5 // pred_region
        %s214 = ssub.s32 %s22, 1
        // Predicated region
        $region13: #{tpu_custom_call.1} parent=11 // pred_check
          %p215 = pneg %p43
        $region14: #{tpu_custom_call.1} parent=11 // pred_check_branch
          %217 = sbr.rel (%p215) target = $region16
        $region15: #{tpu_custom_call.1} parent=11 // pred_region
          %219 = vsyncadd [#allocation6], 0
          %s221 = sshll.u32 %s0, 4
          %s222 = int_to_ptr.vmem [resolvable:$true] %s221
          %224 = dma.vmem_to_smem %s222, 16, [#allocation3], [#allocation6]
        $region16: #{tpu_custom_call.1} parent=11 // pred_fallthru
          _
        // Predicated region
        $region17: #{tpu_custom_call.1} parent=11 // pred_check
          %p225 = pneg %p64
        $region18: #{tpu_custom_call.1} parent=11 // pred_check_branch
          %227 = sbr.rel (%p225) target = $region20
        $region19: #{tpu_custom_call.1} parent=11 // pred_region
          _
        $region20: #{tpu_custom_call.1} parent=11 // pred_fallthru
          _
        // Predicated region
        $region21: #{tpu_custom_call.1} parent=11 // pred_check
          %p228 = pneg %p111
        $region22: #{tpu_custom_call.1} parent=11 // pred_check_branch
          %230 = sbr.rel (%p228) target = $region24
        $region23: #{tpu_custom_call.1} parent=11 // pred_region
          %232 = vsyncadd [#allocation9], 0
          %s233 = sshll.u32 %s3, 4
          %s234 = int_to_ptr.hbm [resolvable:$true] %s233
          %s235 = sshll.u32 [#allocation8], 4
          %s236 = int_to_ptr.vmem [resolvable:$true] %s235
          %241 = dma.hbm_to_vmem [thread:$0]  %s234, 1024, %s236, [#allocation9], 64, 64, 4
        $region24: #{tpu_custom_call.1} parent=11 // pred_fallthru
          _
        // Predicated region
        $region25: #{tpu_custom_call.1} parent=11 // pred_check
          %p242 = pneg %p132
        $region26: #{tpu_custom_call.1} parent=11 // pred_check_branch
          %244 = sbr.rel (%p242) target = $region28
        $region27: #{tpu_custom_call.1} parent=11 // pred_region
          _
        $region28: #{tpu_custom_call.1} parent=11 // pred_fallthru
          _
        // Predicated region
        $region29: #{tpu_custom_call.1} parent=11 // pred_check
          %p245 = pneg %p153
        $region30: #{tpu_custom_call.1} parent=11 // pred_check_branch
          %247 = sbr.rel (%p245) target = $region32
        $region31: #{tpu_custom_call.1} parent=11 // pred_region
          %249 = vsyncadd [#allocation9], 0
          %s250 = sshll.u32 %s5, 4
          %s251 = int_to_ptr.hbm [resolvable:$true] %s250
          %s252 = sshll.u32 [#allocation10], 4
          %s253 = int_to_ptr.vmem [resolvable:$true] %s252
          %258 = dma.hbm_to_vmem [thread:$0]  %s251, 1024, %s253, [#allocation9], 64, 64, 4
        $region32: #{tpu_custom_call.1} parent=11 // pred_fallthru
          _
        // Predicated region
        $region33: #{tpu_custom_call.1} parent=11 // pred_check
          %p259 = pneg %p174
        $region34: #{tpu_custom_call.1} parent=11 // pred_check_branch
          %261 = sbr.rel (%p259) target = $region36
        $region35: #{tpu_custom_call.1} parent=11 // pred_region
          _
        $region36: #{tpu_custom_call.1} parent=11 // pred_fallthru
          _
      $region12: #{tpu_custom_call.1} parent=5 // pred_fallthru
        _
      %p262 = scmp.lt.s32.totalorder %s22, 2
      // Predicated region
      $region37: #{tpu_custom_call.1} parent=5 // pred_check
        %p263 = pneg %p262
      $region38: #{tpu_custom_call.1} parent=5 // pred_check_branch
        %265 = sbr.rel (%p263) target = $region40
      $region39: #{tpu_custom_call.1} parent=5 // pred_region
        // Predicated region
        $region41: #{tpu_custom_call.1} parent=39 // pred_check
          %p266 = pneg %p84
        $region42: #{tpu_custom_call.1} parent=39 // pred_check_branch
          %268 = sbr.rel (%p266) target = $region44
        $region43: #{tpu_custom_call.1} parent=39 // pred_region
          %s269 = sand.u32 %s74, 1
          %s270 = scalar_lea.sflag [#allocation4], %s269
          %s271 = sand.u32 %s74, 1
          %s272 = smul.addr %s271, 8
          %s273 = scalar_lea.vmem [#allocation7], %s272
          %275 = vsyncadd %s270, 0
          %s276 = smul.addr %s22, 8
          %s277 = scalar_lea.hbm %s2, %s276
          %s279 = sshll.u32 %s277, 4
          %s280 = int_to_ptr.hbm [resolvable:$true] %s279
          %s281 = sshll.u32 %s273, 4
          %s282 = int_to_ptr.vmem [resolvable:$true] %s281
          %284 = dma.hbm_to_vmem [thread:$0]  %s280, 128, %s282, %s270
        $region44: #{tpu_custom_call.1} parent=39 // pred_fallthru
          _
      $region40: #{tpu_custom_call.1} parent=5 // pred_fallthru
        _
      %p285 = scmp.le.s32.totalorder 1, %s22
      %p286 = scmp.lt.s32.totalorder %s22, 3
      %p287 = pnand %p285, %p286
      %p288 = pneg %p287
      // Predicated region
      $region45: #{tpu_custom_call.1} parent=5 // pred_check
        _
      $region46: #{tpu_custom_call.1} parent=5 // pred_check_branch
        %290 = sbr.rel (%p287) target = $region48
      $region47: #{tpu_custom_call.1} parent=5 // pred_region
        %s291 = ssub.s32 %s22, 1
        // Predicated region
        $region49: #{tpu_custom_call.1} parent=47 // pred_check
          %p292 = pneg %p43
        $region50: #{tpu_custom_call.1} parent=47 // pred_check_branch
          %294 = sbr.rel (%p292) target = $region52
        $region51: #{tpu_custom_call.1} parent=47 // pred_region
          %296 = dma.done [#allocation6], 16
        $region52: #{tpu_custom_call.1} parent=47 // pred_fallthru
          _
        %s297 = sand.u32 %s77, 1
        %s298 = scalar_lea.sflag [#allocation4], %s297
        %s299 = sand.u32 %s77, 1
        %s300 = smul.addr %s299, 8
        %s301 = scalar_lea.vmem [#allocation7], %s300
        // Predicated region
        $region53: #{tpu_custom_call.1} parent=47 // pred_check
          %p302 = pneg %p90
        $region54: #{tpu_custom_call.1} parent=47 // pred_check_branch
          %304 = sbr.rel (%p302) target = $region56
        $region55: #{tpu_custom_call.1} parent=47 // pred_region
          %306 = dma.done %s298, 128
        $region56: #{tpu_custom_call.1} parent=47 // pred_fallthru
          _
        // Predicated region
        $region57: #{tpu_custom_call.1} parent=47 // pred_check
          %p307 = pneg %p111
        $region58: #{tpu_custom_call.1} parent=47 // pred_check_branch
          %309 = sbr.rel (%p307) target = $region60
        $region59: #{tpu_custom_call.1} parent=47 // pred_region
          %311 = dma.done [#allocation9], 1024
        $region60: #{tpu_custom_call.1} parent=47 // pred_fallthru
          _
        // Predicated region
        $region61: #{tpu_custom_call.1} parent=47 // pred_check
          %p312 = pneg %p153
        $region62: #{tpu_custom_call.1} parent=47 // pred_check_branch
          %314 = sbr.rel (%p312) target = $region64
        $region63: #{tpu_custom_call.1} parent=47 // pred_region
          %316 = dma.done [#allocation9], 1024
        $region64: #{tpu_custom_call.1} parent=47 // pred_fallthru
          _
        %317 = sfence
        %p318 = pneg %p43
        %p319 = pneg %p40
        %p320 = pneg %p64
        %p321 = pneg %p61
        %s322 = sand.u32 %s77, 1
        %s323 = scalar_lea.sflag [#allocation4], %s322
        %s324 = sand.u32 %s77, 1
        %s325 = smul.addr %s324, 8
        %s326 = scalar_lea.vmem [#allocation7], %s325
        %p327 = pneg %p90
        %p328 = pneg %p87
        %p329 = pneg %p111
        %p330 = pneg %p108
        %p331 = pneg %p132
        %p332 = pneg %p129
        %p333 = pneg %p153
        %p334 = pneg %p150
        %p335 = pneg %p174
        %p336 = pneg %p171
        %p337 = pneg %p200
        %p338 = pneg %p197
        %s339 = sand.u32 %s187, 1
        %s340 = scalar_lea.sflag [#allocation5], %s339
        %s341 = sand.u32 %s187, 1
        %s342 = smul.addr %s341, 8
        %s343 = scalar_lea.vmem [#allocation11], %s342
        %v344 = vld [vmem:[%s301] sm:$0xff]
        %s345 = sld [smem:[#allocation3]]
        %s346 = sld [smem:[#allocation3 + $0x1]]
        %s347 = smul.u32 %s27, 8
        %v348 = vlaneseq
        %v349 = vshrl.u32 %v348, 7
        %v350 = vlaneseq
        %v351 = vand.u32 %v350, 127
        %v352 = vstv %s347
        %v353 = vadd.s32 %v349, %v352
        %v354 = vmul.u32 %v353, 128
        %v355 = vadd.s32 %v354, %v351
        %v356 = vstv %s345
        %v357 = vxor.u32 %v355, %v356
        %v358 = vmul.u32 %v357, 2654435761
        %v359 = vshrl.u32 %v358, 15
        %v360 = vxor.u32 %v358, %v359
        %v361 = vmul.u32 %v360, 2246822507
        %v362 = vshrl.u32 %v361, 8
        %v363 = vstv %s346
        %vm364 = vcmp.gt.s32.totalorder %v362, %v363
        %v365 = vsel %vm364, %v344, 0.0
        %v366 = vpack.c.bf16 %v365, %v365
        %v367 = vld [vmem:[#allocation8] sm:$0xf]
        %v368 = vld [vmem:[#allocation8 + $0x4] sm:$0xf]
        %v369 = vld [vmem:[#allocation8 + $0x8] sm:$0xf]
        %v370 = vld [vmem:[#allocation8 + $0xc] sm:$0xf]
        %v371 = vld [vmem:[#allocation8 + $0x10] sm:$0xf]
        %v372 = vld [vmem:[#allocation8 + $0x14] sm:$0xf]
        %v373 = vld [vmem:[#allocation8 + $0x18] sm:$0xf]
        %v374 = vld [vmem:[#allocation8 + $0x1c] sm:$0xf]
        %v375 = vld [vmem:[#allocation8 + $0x20] sm:$0xf]
        %v376 = vld [vmem:[#allocation8 + $0x24] sm:$0xf]
        %v377 = vld [vmem:[#allocation8 + $0x28] sm:$0xf]
        %v378 = vld [vmem:[#allocation8 + $0x2c] sm:$0xf]
        %v379 = vld [vmem:[#allocation8 + $0x30] sm:$0xf]
        %v380 = vld [vmem:[#allocation8 + $0x34] sm:$0xf]
        %v381 = vld [vmem:[#allocation8 + $0x38] sm:$0xf]
        %v382 = vld [vmem:[#allocation8 + $0x3c] sm:$0xf]
        %v383 = vld [vmem:[%s4] sm:$0x1]
        %v385 = vperm.slane %v383, 0
        %v403 = vunpack.c.l.b16 %v367
        %v404 = vunpack.c.l.b16 %v368
        %v405 = vunpack.c.l.b16 %v369
        %v406 = vunpack.c.l.b16 %v370
        %v407 = vunpack.c.l.b16 %v371
        %v408 = vunpack.c.l.b16 %v372
        %v409 = vunpack.c.l.b16 %v373
        %v410 = vunpack.c.l.b16 %v374
        %v411 = vunpack.c.l.b16 %v375
        %v412 = vunpack.c.l.b16 %v376
        %v413 = vunpack.c.l.b16 %v377
        %v414 = vunpack.c.l.b16 %v378
        %v415 = vunpack.c.l.b16 %v379
        %v416 = vunpack.c.l.b16 %v380
        %v417 = vunpack.c.l.b16 %v381
        %v418 = vunpack.c.l.b16 %v382
        %v419 = vpack.c.b16 %v404, %v403
        %v420 = vpack.c.b16 %v406, %v405
        %v421 = vpack.c.b16 %v408, %v407
        %v422 = vpack.c.b16 %v410, %v409
        %v423 = vpack.c.b16 %v412, %v411
        %v424 = vpack.c.b16 %v414, %v413
        %v425 = vpack.c.b16 %v416, %v415
        %v426 = vpack.c.b16 %v418, %v417
        %435 = vmatpush.bf16.msra.mxu0 %v426
        %436 = vmatpush.bf16.msra.mxu0 %v425
        %437 = vmatpush.bf16.msra.mxu0 %v424
        %438 = vmatpush.bf16.msra.mxu0 %v423
        %439 = vmatpush.bf16.msra.mxu0 %v422
        %440 = vmatpush.bf16.msra.mxu0 %v421
        %441 = vmatpush.bf16.msra.mxu0 %v420
        %442 = vmatpush.bf16.msra.mxu0 %v419
        %443 = vmatmul.bf16.gmra.mxu0 %v366
        %v444 = vpop.f32.mrf.mxu0
        %v445 = vadd.f32 %v385, %v444
        %v446 = vpop.f32.mrf.mxu0
        %447 = vdwg.mxu0
        %s448 = sld [smem:[#allocation2]]
        %vm449 = vcmp.gt.f32.partialorder %v445, 0.0
        %v450 = vstv %s448
        %v451 = vmul.f32 %v450, %v445
        %v452 = vsel %vm449, %v445, %v451
        %v453 = vpack.c.bf16 %v452, %v452
        %v454 = vld [vmem:[#allocation10] sm:$0xf]
        %v455 = vld [vmem:[#allocation10 + $0x4] sm:$0xf]
        %v456 = vld [vmem:[#allocation10 + $0x8] sm:$0xf]
        %v457 = vld [vmem:[#allocation10 + $0xc] sm:$0xf]
        %v458 = vld [vmem:[#allocation10 + $0x10] sm:$0xf]
        %v459 = vld [vmem:[#allocation10 + $0x14] sm:$0xf]
        %v460 = vld [vmem:[#allocation10 + $0x18] sm:$0xf]
        %v461 = vld [vmem:[#allocation10 + $0x1c] sm:$0xf]
        %v462 = vld [vmem:[#allocation10 + $0x20] sm:$0xf]
        %v463 = vld [vmem:[#allocation10 + $0x24] sm:$0xf]
        %v464 = vld [vmem:[#allocation10 + $0x28] sm:$0xf]
        %v465 = vld [vmem:[#allocation10 + $0x2c] sm:$0xf]
        %v466 = vld [vmem:[#allocation10 + $0x30] sm:$0xf]
        %v467 = vld [vmem:[#allocation10 + $0x34] sm:$0xf]
        %v468 = vld [vmem:[#allocation10 + $0x38] sm:$0xf]
        %v469 = vld [vmem:[#allocation10 + $0x3c] sm:$0xf]
        %v470 = vld [vmem:[%s6] sm:$0x1]
        %v472 = vperm.slane %v470, 0
        %v490 = vunpack.c.l.b16 %v454
        %v491 = vunpack.c.l.b16 %v455
        %v492 = vunpack.c.l.b16 %v456
        %v493 = vunpack.c.l.b16 %v457
        %v494 = vunpack.c.l.b16 %v458
        %v495 = vunpack.c.l.b16 %v459
        %v496 = vunpack.c.l.b16 %v460
        %v497 = vunpack.c.l.b16 %v461
        %v498 = vunpack.c.l.b16 %v462
        %v499 = vunpack.c.l.b16 %v463
        %v500 = vunpack.c.l.b16 %v464
        %v501 = vunpack.c.l.b16 %v465
        %v502 = vunpack.c.l.b16 %v466
        %v503 = vunpack.c.l.b16 %v467
        %v504 = vunpack.c.l.b16 %v468
        %v505 = vunpack.c.l.b16 %v469
        %v506 = vpack.c.b16 %v491, %v490
        %v507 = vpack.c.b16 %v493, %v492
        %v508 = vpack.c.b16 %v495, %v494
        %v509 = vpack.c.b16 %v497, %v496
        %v510 = vpack.c.b16 %v499, %v498
        %v511 = vpack.c.b16 %v501, %v500
        %v512 = vpack.c.b16 %v503, %v502
        %v513 = vpack.c.b16 %v505, %v504
        %522 = vmatpush.bf16.msra.mxu0 %v513
        %523 = vmatpush.bf16.msra.mxu0 %v512
        %524 = vmatpush.bf16.msra.mxu0 %v511
        %525 = vmatpush.bf16.msra.mxu0 %v510
        %526 = vmatpush.bf16.msra.mxu0 %v509
        %527 = vmatpush.bf16.msra.mxu0 %v508
        %528 = vmatpush.bf16.msra.mxu0 %v507
        %529 = vmatpush.bf16.msra.mxu0 %v506
        %530 = vmatmul.bf16.gmra.mxu0 %v453
        %v531 = vpop.f32.mrf.mxu0
        %v532 = vadd.f32 %v472, %v531
        %v533 = vpop.f32.mrf.mxu0
        %534 = vdwg.mxu0
        %535 = vst [vmem:[%s343] sm:$0xff] %v532
        %s536 = sand.u32 %s187, 1
        %s537 = scalar_lea.sflag [#allocation5], %s536
        %s538 = sand.u32 %s187, 1
        %s539 = smul.addr %s538, 8
        %s540 = scalar_lea.vmem [#allocation11], %s539
        // Predicated region
        $region65: #{tpu_custom_call.1} parent=47 // pred_check
          %p541 = pneg %p197
        $region66: #{tpu_custom_call.1} parent=47 // pred_check_branch
          %543 = sbr.rel (%p541) target = $region68
        $region67: #{tpu_custom_call.1} parent=47 // pred_region
          %545 = vsyncadd %s537, 0
          %s546 = smul.addr %s27, 8
          %s547 = scalar_lea.hbm %s7, %s546
          %s549 = sshll.u32 %s540, 4
          %s550 = int_to_ptr.vmem [resolvable:$true] %s549
          %s551 = sshll.u32 %s547, 4
          %s552 = int_to_ptr.hbm [resolvable:$true] %s551
          %554 = dma.vmem_to_hbm [thread:$0]  %s550, 128, %s552, %s537
        $region68: #{tpu_custom_call.1} parent=47 // pred_fallthru
          _
      $region48: #{tpu_custom_call.1} parent=5 // pred_fallthru
        _
      %p555 = scmp.le.s32.totalorder 2, %s22
      // Predicated region
      $region69: #{tpu_custom_call.1} parent=5 // pred_check
        %p556 = pneg %p555
      $region70: #{tpu_custom_call.1} parent=5 // pred_check_branch
        %558 = sbr.rel (%p556) target = $region72
      $region71: #{tpu_custom_call.1} parent=5 // pred_region
        %s559 = ssub.s32 %s22, 2
        // Predicated region
        $region73: #{tpu_custom_call.1} parent=71 // pred_check
          %p560 = pneg %p203
        $region74: #{tpu_custom_call.1} parent=71 // pred_check_branch
          %562 = sbr.rel (%p560) target = $region76
        $region75: #{tpu_custom_call.1} parent=71 // pred_region
          %s563 = sand.u32 %s188, 1
          %s564 = scalar_lea.sflag [#allocation5], %s563
          %s565 = sand.u32 %s188, 1
          %s566 = smul.addr %s565, 8
          %s567 = scalar_lea.vmem [#allocation11], %s566
          %569 = dma.done %s564, 128
        $region76: #{tpu_custom_call.1} parent=71 // pred_fallthru
          _
      $region72: #{tpu_custom_call.1} parent=5 // pred_fallthru
        _
    $region6: #{tpu_custom_call.1} parent=1 // loop_footer
      %s26 = sadd.s32 1, %s22
    $region7: #{tpu_custom_call.1} parent=1 // loop_footer_branch
      %21 = sbr.rel target = $region3
    $region8: #{tpu_custom_call.1} parent=1 // loop_exit
      _
    %570 = vsyncpa [#allocation4], 1
    %s571 = scalar_lea.sflag [#allocation4], 1
    %572 = vsyncpa %s571, 1
    %573 = vsyncpa [#allocation9], 1
    %574 = vsyncpa [#allocation5], 1
    %s575 = scalar_lea.sflag [#allocation5], 1
    %576 = vsyncpa %s575, 1
    %577 = vsyncpa [#allocation6], 1
    %s578 = scalar_lea.sflag [#allocation6], 1
    %579 = vsyncpa %s578, 1

</llo_original>
